<compile_context>
chip_gen: v5e
topology: v5e:2x2
jax: 0.10.0
libtpu: 0.0.40
codegen_flags: <defaults>
</compile_context>

<pallas_src>
import functools

import jax
import jax.numpy as jnp
from jax.experimental import pallas as pl
from jax.experimental.pallas import tpu as pltpu


# ----------------------------------------------------------------------------
# Fused Pallas kernel
# ----------------------------------------------------------------------------
def _gatnet_fused_kernel(x_ref, adj_ref, pool_ref,
                         w1_ref, a1_ref, b1_ref,
                         w2_ref, a2_ref, b2_ref,
                         w3_ref, a3_ref, b3_ref,
                         out_ref, *, layer_cfg, neg_slope=0.2):
    """Fused GATNet forward pass.

    x_ref    : [N, F_in]            node features
    adj_ref  : [N, N]               adj[dst, src] in {0,1}, self-loops included
    pool_ref : [G, N]               normalized mean-pool matrix
    w*_ref   : [F_in_l, H_l * F_l]  GATConv lin weight (no bias)
    a*_ref   : [H_l * F_l, 2*H_l]   fused block att_src (cols 0:H) / att_dst (cols H:2H)
    b*_ref   : [1, out_dim_l]       GATConv bias
    out_ref  : [G, C]               sigmoid(global_mean_pool(x3))
    """
    # Edge-mask bias, hoisted ONCE for all heads of all three layers.
    mask_bias = jnp.where(adj_ref[...] > 0.0, 0.0, -1e30)               # [N, N]

    def to_hnf(x_nhf):
        # [N, H, F] -> [H, N, F] with one layout-aware relayout.
        if hasattr(pltpu, "einshape"):
            return pltpu.einshape("nhf->hnf", x_nhf)
        return jnp.transpose(x_nhf, (1, 0, 2))

    def to_nhf(x_hnf):
        # [H, N, F] -> [N, H, F].
        if hasattr(pltpu, "einshape"):
            return pltpu.einshape("hnf->nhf", x_hnf)
        return jnp.transpose(x_hnf, (1, 0, 2))

    def gat_layer(x, w_ref, att_ref, bias_ref, heads, f_out, concat, relu):
        n = x.shape[0]
        # Feature transform on the MXU: [N, F_in] @ [F_in, H*F].
        xp = jnp.dot(x, w_ref[...], preferred_element_type=jnp.float32)

        # Fused per-head attention logits: ONE matmul against the [H*F, 2H]
        # operand (cols 0:H = src scores, cols H:2H = dst scores), then ONE
        # transpose and two sublane slices.
        sd = jnp.dot(xp, att_ref[...], preferred_element_type=jnp.float32)  # [N, 2H]
        sd_t = jnp.transpose(sd)                                            # [2H, N]
        src_t = sd_t[:heads, :]                                             # [H, N]
        dst_t = sd_t[heads:, :]                                             # [H, N]

        # e[h, i, j] = dst[h, i] + src[h, j]   (i = target, j = source)
        # Single broadcasted add — no per-head slices or stacks.
        e = dst_t[:, :, None] + src_t[:, None, :]                           # [H, N, N]
        e = jnp.where(e > 0.0, e, neg_slope * e)                            # LeakyReLU
        e = e + mask_bias[None, :, :]                                       # mask non-edges

        # Head-batched masked softmax over sources j. Masked entries sit at
        # ~-1e30 and exponentiate to exactly 0 (every row has a self-loop),
        # so no `* adj` multiply is needed. Exact normalization (the [.,N,1]
        # denominator is tiny and EUP/VPU have slack here).
        e = e - jnp.max(e, axis=-1, keepdims=True)
        p = jnp.exp(e)
        attn = p / jnp.sum(p, axis=-1, keepdims=True)                       # [H, N, N]
        # TODO(synk): attention dropout (p=0.6) is train-time only; inference = identity.

        # [N, H*F] -> [H, N, F] with one relayout, then a single head-batched
        # MXU contraction (instead of H narrow matmuls).
        xh = to_hnf(xp.reshape(n, heads, f_out))                            # [H, N, F]
        agg = jnp.einsum('hij,hjf->hif', attn, xh,
                         preferred_element_type=jnp.float32)                # [H, N, F]

        if concat:
            out = to_nhf(agg).reshape(n, heads * f_out)                     # [N, H*F]
        else:
            out = jnp.mean(agg, axis=0)                                     # [N, F]
        out = out + bias_ref[...]
        if relu:
            out = jnp.maximum(out, 0.0)
        return out

    (h1, f1, c1, r1), (h2, f2, c2, r2), (h3, f3, c3, r3) = layer_cfg
    x = x_ref[...]
    x = gat_layer(x, w1_ref, a1_ref, b1_ref, h1, f1, c1, r1)
    x = gat_layer(x, w2_ref, a2_ref, b2_ref, h2, f2, c2, r2)
    x = gat_layer(x, w3_ref, a3_ref, b3_ref, h3, f3, c3, r3)

    # global_mean_pool as one matmul with the normalized pooling matrix, then
    # sigmoid via EUP exp + approx reciprocal. Single store of the output.
    z = jnp.dot(pool_ref[...], x, preferred_element_type=jnp.float32)       # [G, C]
    out_ref[...] = pl.reciprocal(1.0 + jnp.exp(-z), approx=True)


# ----------------------------------------------------------------------------
# Wrapper
# ----------------------------------------------------------------------------
_VMEM = pl.BlockSpec(memory_space=pltpu.MemorySpace.VMEM)


def _block_att_pair(att_src, att_dst):
    """[H, F] attention vectors -> ONE [H*F, 2H] block-structured matrix so
    xp @ M yields all per-head src scores (cols 0:H) and dst scores (cols
    H:2H) with a single MXU matmul per layer."""
    heads, f_out = att_src.shape
    eye = jnp.eye(heads, dtype=att_src.dtype)
    blk_src = (att_src[:, :, None] * eye[:, None, :]).reshape(heads * f_out, heads)
    blk_dst = (att_dst[:, :, None] * eye[:, None, :]).reshape(heads * f_out, heads)
    return jnp.concatenate([blk_src, blk_dst], axis=1)


def gatnet_forward(params, x, adj, pool_mat):
    p1, p2, p3 = params["conv1"], params["conv2"], params["conv3"]
    out_channels = p3["bias"].shape[0]
    layer_cfg = ((4, 16, True, True),              # conv1: heads=4, F=16, concat, relu
                 (4, 32, True, True),              # conv2: heads=4, F=32, concat, relu
                 (1, out_channels, False, False))  # conv3: heads=1, mean, no relu
    num_graphs = pool_mat.shape[0]
    n = x.shape[0]

    args = [x, adj, pool_mat]
    for p in (p1, p2, p3):
        args += [p["w"], _block_att_pair(p["att_src"], p["att_dst"]),
                 p["bias"].reshape(1, -1)]

    # Advisory cost estimate so XLA can schedule surrounding HLO around this
    # custom call when it is embedded in a larger jit.
    flops, trans = 0, 0
    f_in = x.shape[1]
    for heads, f, concat, _ in layer_cfg:
        hf = heads * f
        flops += 2 * n * f_in * hf           # feature transform
        flops += 2 * n * hf * (2 * heads)    # fused attention-logit matmul
        flops += 2 * heads * n * n * f       # attention-weighted aggregation
        trans += heads * n * n               # softmax exp
        f_in = hf if concat else f
    flops += 2 * num_graphs * n * out_channels
    trans += num_graphs * out_channels       # sigmoid exp
    bytes_accessed = int(sum(a.size * a.dtype.itemsize for a in args)
                         + num_graphs * out_channels * 4)

    kernel = functools.partial(_gatnet_fused_kernel, layer_cfg=layer_cfg)
    return pl.pallas_call(
        kernel,
        out_shape=jax.ShapeDtypeStruct((num_graphs, out_channels), jnp.float32),
        in_specs=[_VMEM] * len(args),
        out_specs=_VMEM,
        cost_estimate=pl.CostEstimate(flops=int(flops), transcendentals=int(trans),
                                      bytes_accessed=bytes_accessed),
    )(*args)


# ----------------------------------------------------------------------------
# Pure-JAX reference (same dense-adjacency math) for a correctness check
# ----------------------------------------------------------------------------
def _ref_gat_layer(x, w, att_src, att_dst, bias, adj, heads, fout, concat, relu):
    xp = x @ w
    outs = []
    for h in range(heads):
        xh = xp[:, h * fout:(h + 1) * fout]
        src = (xh * att_src[h][None, :]).sum(1)
        dst = (xh * att_dst[h][None, :]).sum(1)
        e = dst[:, None] + src[None, :]
        e = jnp.where(e > 0, e, 0.2 * e)
        e = jnp.where(adj > 0, e, -1e30)
        e = e - e.max(1, keepdims=True)
        p = jnp.exp(e) * adj
        attn = p / p.sum(1, keepdims=True)
        outs.append(attn @ xh)
    out = jnp.concatenate(outs, 1) if concat else sum(outs) / heads
    out = out + bias[None, :]
    return jnp.maximum(out, 0.0) if relu else out


def _ref_forward(params, x, adj, pool_mat):
    p1, p2, p3 = params["conv1"], params["conv2"], params["conv3"]
    x = _ref_gat_layer(x, p1["w"], p1["att_src"], p1["att_dst"], p1["bias"],
                       adj, 4, 16, True, True)
    x = _ref_gat_layer(x, p2["w"], p2["att_src"], p2["att_dst"], p2["bias"],
                       adj, 4, 32, True, True)
    x = _ref_gat_layer(x, p3["w"], p3["att_src"], p3["att_dst"], p3["bias"],
                       adj, 1, p3["bias"].shape[0], False, False)
    return jax.nn.sigmoid(pool_mat @ x)


# ----------------------------------------------------------------------------
# Main
# ----------------------------------------------------------------------------
if __name__ == "__main__":
    key = jax.random.PRNGKey(0)
    in_channels = 8
    out_channels = 4
    nodes_per_graph = 8
    num_graphs = 2
    N = nodes_per_graph * num_graphs

    def init_gat(key, f_in, f_out, heads):
        k1, k2, k3, k4 = jax.random.split(key, 4)
        return {
            "w": 0.1 * jax.random.normal(k1, (f_in, heads * f_out), jnp.float32),
            "att_src": 0.1 * jax.random.normal(k2, (heads, f_out), jnp.float32),
            "att_dst": 0.1 * jax.random.normal(k3, (heads, f_out), jnp.float32),
            "bias": 0.1 * jax.random.normal(
                k4, (heads * f_out if heads > 1 else f_out,), jnp.float32),
        }

    k0, k1, k2, k3, kx = jax.random.split(key, 5)
    params = {
        "conv1": init_gat(k1, in_channels, 16, 4),           # -> 64 (concat)
        "conv2": init_gat(k2, 16 * 4, 32, 4),                # -> 128 (concat)
        "conv3": init_gat(k3, 32 * 4, out_channels, 1),      # -> out_channels (mean)
    }

    # Node features.
    x = jax.random.normal(kx, (N, in_channels), jnp.float32)

    # Deterministic edge_index: bidirectional ring inside each graph,
    # densified to adj[dst, src] with self-loops (PyG GATConv default).
    src_list, dst_list = [], []
    for g in range(num_graphs):
        base = g * nodes_per_graph
        for i in range(nodes_per_graph):
            a, b = base + i, base + (i + 1) % nodes_per_graph
            src_list += [a, b]
            dst_list += [b, a]
    adj = jnp.zeros((N, N), jnp.float32)
    adj = adj.at[jnp.array(dst_list), jnp.array(src_list)].set(1.0)
    adj = adj.at[jnp.arange(N), jnp.arange(N)].set(1.0)  # self-loops

    # batch vector -> normalized pooling matrix [G, N].
    batch = jnp.repeat(jnp.arange(num_graphs), nodes_per_graph)
    onehot = (batch[None, :] == jnp.arange(num_graphs)[:, None]).astype(jnp.float32)
    pool_mat = onehot / onehot.sum(axis=1, keepdims=True)

    fwd = jax.jit(gatnet_forward)
    out = jax.block_until_ready(fwd(params, x, adj, pool_mat))

    ref = _ref_forward(params, x, adj, pool_mat)
    assert out.shape == (num_graphs, out_channels)
    # Softmax normalization is exact now; the tolerance only needs to cover
    # the approx reciprocal in the final sigmoid (kept loose for safety).
    assert jnp.allclose(out, ref, rtol=5e-3, atol=5e-3), (out, ref)

    print("KERNEL_OK")
</pallas_src>

<mosaic_0001>
module attributes {stable_mosaic.version = 11 : i64} {
  func.func @_gatnet_fused_kernel(%arg0: memref<16x8xf32, #tpu.memory_space<vmem>>, %arg1: memref<16x16xf32, #tpu.memory_space<vmem>>, %arg2: memref<2x16xf32, #tpu.memory_space<vmem>>, %arg3: memref<8x64xf32, #tpu.memory_space<vmem>>, %arg4: memref<64x8xf32, #tpu.memory_space<vmem>>, %arg5: memref<1x64xf32, #tpu.memory_space<vmem>>, %arg6: memref<64x128xf32, #tpu.memory_space<vmem>>, %arg7: memref<128x8xf32, #tpu.memory_space<vmem>>, %arg8: memref<1x128xf32, #tpu.memory_space<vmem>>, %arg9: memref<128x4xf32, #tpu.memory_space<vmem>>, %arg10: memref<4x2xf32, #tpu.memory_space<vmem>>, %arg11: memref<1x4xf32, #tpu.memory_space<vmem>>, %arg12: memref<2x4xf32, #tpu.memory_space<vmem>>) attributes {dimension_semantics = [], scalar_prefetch = 0 : i64, scratch_operands = 0 : i64, tpu.core_type = #tpu.core_type<tc>} {
    %c0 = arith.constant 0 : index
    %c0_0 = arith.constant 0 : index
    %0 = vector.load %arg1[%c0, %c0_0] : memref<16x16xf32, #tpu.memory_space<vmem>>, vector<16x16xf32>
    %cst = arith.constant 0.000000e+00 : f32
    %1 = vector.broadcast %cst : f32 to vector<16x16xf32>
    %2 = arith.cmpf ogt, %0, %1 : vector<16x16xf32>
    %cst_1 = arith.constant 0.000000e+00 : f32
    %cst_2 = arith.constant -1.000000e+30 : f32
    %3 = vector.broadcast %cst_1 : f32 to vector<16x16xf32>
    %4 = vector.broadcast %cst_2 : f32 to vector<16x16xf32>
    %5 = arith.select %2, %3, %4 : vector<16x16xi1>, vector<16x16xf32>
    %c0_3 = arith.constant 0 : index
    %c0_4 = arith.constant 0 : index
    %6 = vector.load %arg0[%c0_3, %c0_4] : memref<16x8xf32, #tpu.memory_space<vmem>>, vector<16x8xf32>
    %c0_5 = arith.constant 0 : index
    %c0_6 = arith.constant 0 : index
    %7 = vector.load %arg3[%c0_5, %c0_6] : memref<8x64xf32, #tpu.memory_space<vmem>>, vector<8x64xf32>
    %cst_7 = arith.constant dense<0.000000e+00> : vector<16x64xf32>
    %8 = tpu.matmul %6, %7, %cst_7 {dimension_numbers = #tpu.dot_dimension_numbers<[1], [0], [0], [1], [0, 0, 1, 1], [], []>} : vector<16x8xf32>, vector<8x64xf32>, vector<16x64xf32> -> vector<16x64xf32>
    %c0_8 = arith.constant 0 : index
    %c0_9 = arith.constant 0 : index
    %9 = vector.load %arg4[%c0_8, %c0_9] : memref<64x8xf32, #tpu.memory_space<vmem>>, vector<64x8xf32>
    %cst_10 = arith.constant dense<0.000000e+00> : vector<16x8xf32>
    %10 = tpu.matmul %8, %9, %cst_10 {dimension_numbers = #tpu.dot_dimension_numbers<[1], [0], [0], [1], [0, 0, 1, 1], [], []>} : vector<16x64xf32>, vector<64x8xf32>, vector<16x8xf32> -> vector<16x8xf32>
    %11 = tpu.transpose %10, [1, 0] : vector<16x8xf32> -> vector<8x16xf32>
    %12 = vector.extract_strided_slice %11 {offsets = [0, 0], sizes = [4, 16], strides = [1, 1]} : vector<8x16xf32> to vector<4x16xf32>
    %13 = vector.extract_strided_slice %11 {offsets = [4, 0], sizes = [4, 16], strides = [1, 1]} : vector<8x16xf32> to vector<4x16xf32>
    %14 = vector.shape_cast %13 : vector<4x16xf32> to vector<4x16x1xf32>
    %15 = vector.shape_cast %12 : vector<4x16xf32> to vector<4x1x16xf32>
    %16 = vector.broadcast %14 : vector<4x16x1xf32> to vector<4x16x16xf32>
    %17 = vector.broadcast %15 : vector<4x1x16xf32> to vector<4x16x16xf32>
    %18 = arith.addf %16, %17 : vector<4x16x16xf32>
    %cst_11 = arith.constant 0.000000e+00 : f32
    %19 = vector.broadcast %cst_11 : f32 to vector<4x16x16xf32>
    %20 = arith.cmpf ogt, %18, %19 : vector<4x16x16xf32>
    %cst_12 = arith.constant 2.000000e-01 : f32
    %21 = vector.broadcast %cst_12 : f32 to vector<4x16x16xf32>
    %22 = arith.mulf %21, %18 : vector<4x16x16xf32>
    %23 = arith.select %20, %18, %22 : vector<4x16x16xi1>, vector<4x16x16xf32>
    %24 = vector.shape_cast %5 : vector<16x16xf32> to vector<1x16x16xf32>
    %25 = vector.broadcast %24 : vector<1x16x16xf32> to vector<4x16x16xf32>
    %26 = arith.addf %23, %25 : vector<4x16x16xf32>
    %cst_13 = arith.constant dense<0xFF800000> : vector<4x16xf32>
    %27 = vector.multi_reduction <maximumf>, %26, %cst_13 [2] : vector<4x16x16xf32> to vector<4x16xf32>
    %28 = vector.shape_cast %27 : vector<4x16xf32> to vector<4x16x1xf32>
    %29 = vector.broadcast %28 : vector<4x16x1xf32> to vector<4x16x16xf32>
    %30 = arith.subf %26, %29 : vector<4x16x16xf32>
    %31 = math.exp %30 : vector<4x16x16xf32>
    %cst_14 = arith.constant dense<0.000000e+00> : vector<4x16xf32>
    %32 = vector.multi_reduction <add>, %31, %cst_14 [2] : vector<4x16x16xf32> to vector<4x16xf32>
    %33 = vector.shape_cast %32 : vector<4x16xf32> to vector<4x16x1xf32>
    %34 = vector.broadcast %33 : vector<4x16x1xf32> to vector<4x16x16xf32>
    %35 = arith.divf %31, %34 : vector<4x16x16xf32>
    %36 = vector.shape_cast %8 : vector<16x64xf32> to vector<16x4x16xf32>
    %37 = tpu.transpose %36, [1, 0, 2] : vector<16x4x16xf32> -> vector<4x16x16xf32>
    "tpu.trace_start"() <{level = 10 : i32, message = "hij,hjf->hif"}> : () -> ()
    %cst_15 = arith.constant dense<0.000000e+00> : vector<4x16x16xf32>
    %38 = tpu.matmul %35, %37, %cst_15 {dimension_numbers = #tpu.dot_dimension_numbers<[2], [1], [1], [2], [0, 0, 0, 1, 1, 2], [0], [0]>} : vector<4x16x16xf32>, vector<4x16x16xf32>, vector<4x16x16xf32> -> vector<4x16x16xf32>
    "tpu.trace_stop"() : () -> ()
    %39 = tpu.transpose %38, [1, 0, 2] : vector<4x16x16xf32> -> vector<16x4x16xf32>
    %40 = vector.shape_cast %39 : vector<16x4x16xf32> to vector<16x64xf32>
    %c0_16 = arith.constant 0 : index
    %c0_17 = arith.constant 0 : index
    %41 = vector.load %arg5[%c0_16, %c0_17] : memref<1x64xf32, #tpu.memory_space<vmem>>, vector<1x64xf32>
    %42 = vector.broadcast %41 : vector<1x64xf32> to vector<16x64xf32>
    %43 = arith.addf %40, %42 : vector<16x64xf32>
    %cst_18 = arith.constant 0.000000e+00 : f32
    %44 = vector.broadcast %cst_18 : f32 to vector<16x64xf32>
    %45 = arith.maximumf %43, %44 : vector<16x64xf32>
    %c0_19 = arith.constant 0 : index
    %c0_20 = arith.constant 0 : index
    %46 = vector.load %arg6[%c0_19, %c0_20] : memref<64x128xf32, #tpu.memory_space<vmem>>, vector<64x128xf32>
    %cst_21 = arith.constant dense<0.000000e+00> : vector<16x128xf32>
    %47 = tpu.matmul %45, %46, %cst_21 {dimension_numbers = #tpu.dot_dimension_numbers<[1], [0], [0], [1], [0, 0, 1, 1], [], []>} : vector<16x64xf32>, vector<64x128xf32>, vector<16x128xf32> -> vector<16x128xf32>
    %c0_22 = arith.constant 0 : index
    %c0_23 = arith.constant 0 : index
    %48 = vector.load %arg7[%c0_22, %c0_23] : memref<128x8xf32, #tpu.memory_space<vmem>>, vector<128x8xf32>
    %cst_24 = arith.constant dense<0.000000e+00> : vector<16x8xf32>
    %49 = tpu.matmul %47, %48, %cst_24 {dimension_numbers = #tpu.dot_dimension_numbers<[1], [0], [0], [1], [0, 0, 1, 1], [], []>} : vector<16x128xf32>, vector<128x8xf32>, vector<16x8xf32> -> vector<16x8xf32>
    %50 = tpu.transpose %49, [1, 0] : vector<16x8xf32> -> vector<8x16xf32>
    %51 = vector.extract_strided_slice %50 {offsets = [0, 0], sizes = [4, 16], strides = [1, 1]} : vector<8x16xf32> to vector<4x16xf32>
    %52 = vector.extract_strided_slice %50 {offsets = [4, 0], sizes = [4, 16], strides = [1, 1]} : vector<8x16xf32> to vector<4x16xf32>
    %53 = vector.shape_cast %52 : vector<4x16xf32> to vector<4x16x1xf32>
    %54 = vector.shape_cast %51 : vector<4x16xf32> to vector<4x1x16xf32>
    %55 = vector.broadcast %53 : vector<4x16x1xf32> to vector<4x16x16xf32>
    %56 = vector.broadcast %54 : vector<4x1x16xf32> to vector<4x16x16xf32>
    %57 = arith.addf %55, %56 : vector<4x16x16xf32>
    %cst_25 = arith.constant 0.000000e+00 : f32
    %58 = vector.broadcast %cst_25 : f32 to vector<4x16x16xf32>
    %59 = arith.cmpf ogt, %57, %58 : vector<4x16x16xf32>
    %cst_26 = arith.constant 2.000000e-01 : f32
    %60 = vector.broadcast %cst_26 : f32 to vector<4x16x16xf32>
    %61 = arith.mulf %60, %57 : vector<4x16x16xf32>
    %62 = arith.select %59, %57, %61 : vector<4x16x16xi1>, vector<4x16x16xf32>
    %63 = vector.shape_cast %5 : vector<16x16xf32> to vector<1x16x16xf32>
    %64 = vector.broadcast %63 : vector<1x16x16xf32> to vector<4x16x16xf32>
    %65 = arith.addf %62, %64 : vector<4x16x16xf32>
    %cst_27 = arith.constant dense<0xFF800000> : vector<4x16xf32>
    %66 = vector.multi_reduction <maximumf>, %65, %cst_27 [2] : vector<4x16x16xf32> to vector<4x16xf32>
    %67 = vector.shape_cast %66 : vector<4x16xf32> to vector<4x16x1xf32>
    %68 = vector.broadcast %67 : vector<4x16x1xf32> to vector<4x16x16xf32>
    %69 = arith.subf %65, %68 : vector<4x16x16xf32>
    %70 = math.exp %69 : vector<4x16x16xf32>
    %cst_28 = arith.constant dense<0.000000e+00> : vector<4x16xf32>
    %71 = vector.multi_reduction <add>, %70, %cst_28 [2] : vector<4x16x16xf32> to vector<4x16xf32>
    %72 = vector.shape_cast %71 : vector<4x16xf32> to vector<4x16x1xf32>
    %73 = vector.broadcast %72 : vector<4x16x1xf32> to vector<4x16x16xf32>
    %74 = arith.divf %70, %73 : vector<4x16x16xf32>
    %75 = vector.shape_cast %47 : vector<16x128xf32> to vector<16x4x32xf32>
    %76 = tpu.transpose %75, [1, 0, 2] : vector<16x4x32xf32> -> vector<4x16x32xf32>
    "tpu.trace_start"() <{level = 10 : i32, message = "hij,hjf->hif"}> : () -> ()
    %cst_29 = arith.constant dense<0.000000e+00> : vector<4x16x32xf32>
    %77 = tpu.matmul %74, %76, %cst_29 {dimension_numbers = #tpu.dot_dimension_numbers<[2], [1], [1], [2], [0, 0, 0, 1, 1, 2], [0], [0]>} : vector<4x16x16xf32>, vector<4x16x32xf32>, vector<4x16x32xf32> -> vector<4x16x32xf32>
    "tpu.trace_stop"() : () -> ()
    %78 = tpu.transpose %77, [1, 0, 2] : vector<4x16x32xf32> -> vector<16x4x32xf32>
    %79 = vector.shape_cast %78 : vector<16x4x32xf32> to vector<16x128xf32>
    %c0_30 = arith.constant 0 : index
    %c0_31 = arith.constant 0 : index
    %80 = vector.load %arg8[%c0_30, %c0_31] : memref<1x128xf32, #tpu.memory_space<vmem>>, vector<1x128xf32>
    %81 = vector.broadcast %80 : vector<1x128xf32> to vector<16x128xf32>
    %82 = arith.addf %79, %81 : vector<16x128xf32>
    %cst_32 = arith.constant 0.000000e+00 : f32
    %83 = vector.broadcast %cst_32 : f32 to vector<16x128xf32>
    %84 = arith.maximumf %82, %83 : vector<16x128xf32>
    %c0_33 = arith.constant 0 : index
    %c0_34 = arith.constant 0 : index
    %85 = vector.load %arg9[%c0_33, %c0_34] : memref<128x4xf32, #tpu.memory_space<vmem>>, vector<128x4xf32>
    %cst_35 = arith.constant dense<0.000000e+00> : vector<16x4xf32>
    %86 = tpu.matmul %84, %85, %cst_35 {dimension_numbers = #tpu.dot_dimension_numbers<[1], [0], [0], [1], [0, 0, 1, 1], [], []>} : vector<16x128xf32>, vector<128x4xf32>, vector<16x4xf32> -> vector<16x4xf32>
    %c0_36 = arith.constant 0 : index
    %c0_37 = arith.constant 0 : index
    %87 = vector.load %arg10[%c0_36, %c0_37] : memref<4x2xf32, #tpu.memory_space<vmem>>, vector<4x2xf32>
    %cst_38 = arith.constant dense<0.000000e+00> : vector<16x2xf32>
    %88 = tpu.matmul %86, %87, %cst_38 {dimension_numbers = #tpu.dot_dimension_numbers<[1], [0], [0], [1], [0, 0, 1, 1], [], []>} : vector<16x4xf32>, vector<4x2xf32>, vector<16x2xf32> -> vector<16x2xf32>
    %89 = tpu.transpose %88, [1, 0] : vector<16x2xf32> -> vector<2x16xf32>
    %90 = vector.extract_strided_slice %89 {offsets = [0, 0], sizes = [1, 16], strides = [1, 1]} : vector<2x16xf32> to vector<1x16xf32>
    %91 = vector.extract_strided_slice %89 {offsets = [1, 0], sizes = [1, 16], strides = [1, 1]} : vector<2x16xf32> to vector<1x16xf32>
    %92 = vector.shape_cast %91 : vector<1x16xf32> to vector<1x16x1xf32>
    %93 = vector.shape_cast %90 : vector<1x16xf32> to vector<1x1x16xf32>
    %94 = vector.broadcast %92 : vector<1x16x1xf32> to vector<1x16x16xf32>
    %95 = vector.broadcast %93 : vector<1x1x16xf32> to vector<1x16x16xf32>
    %96 = arith.addf %94, %95 : vector<1x16x16xf32>
    %cst_39 = arith.constant 0.000000e+00 : f32
    %97 = vector.broadcast %cst_39 : f32 to vector<1x16x16xf32>
    %98 = arith.cmpf ogt, %96, %97 : vector<1x16x16xf32>
    %cst_40 = arith.constant 2.000000e-01 : f32
    %99 = vector.broadcast %cst_40 : f32 to vector<1x16x16xf32>
    %100 = arith.mulf %99, %96 : vector<1x16x16xf32>
    %101 = arith.select %98, %96, %100 : vector<1x16x16xi1>, vector<1x16x16xf32>
    %102 = vector.shape_cast %5 : vector<16x16xf32> to vector<1x16x16xf32>
    %103 = arith.addf %101, %102 : vector<1x16x16xf32>
    %cst_41 = arith.constant dense<0xFF800000> : vector<1x16xf32>
    %104 = vector.multi_reduction <maximumf>, %103, %cst_41 [2] : vector<1x16x16xf32> to vector<1x16xf32>
    %105 = vector.shape_cast %104 : vector<1x16xf32> to vector<1x16x1xf32>
    %106 = vector.broadcast %105 : vector<1x16x1xf32> to vector<1x16x16xf32>
    %107 = arith.subf %103, %106 : vector<1x16x16xf32>
    %108 = math.exp %107 : vector<1x16x16xf32>
    %cst_42 = arith.constant dense<0.000000e+00> : vector<1x16xf32>
    %109 = vector.multi_reduction <add>, %108, %cst_42 [2] : vector<1x16x16xf32> to vector<1x16xf32>
    %110 = vector.shape_cast %109 : vector<1x16xf32> to vector<1x16x1xf32>
    %111 = vector.broadcast %110 : vector<1x16x1xf32> to vector<1x16x16xf32>
    %112 = arith.divf %108, %111 : vector<1x16x16xf32>
    %113 = vector.shape_cast %86 : vector<16x4xf32> to vector<16x1x4xf32>
    %114 = tpu.transpose %113, [1, 0, 2] : vector<16x1x4xf32> -> vector<1x16x4xf32>
    "tpu.trace_start"() <{level = 10 : i32, message = "hij,hjf->hif"}> : () -> ()
    %cst_43 = arith.constant dense<0.000000e+00> : vector<1x16x4xf32>
    %115 = tpu.matmul %112, %114, %cst_43 {dimension_numbers = #tpu.dot_dimension_numbers<[2], [1], [1], [2], [0, 0, 0, 1, 1, 2], [0], [0]>} : vector<1x16x16xf32>, vector<1x16x4xf32>, vector<1x16x4xf32> -> vector<1x16x4xf32>
    "tpu.trace_stop"() : () -> ()
    %cst_44 = arith.constant dense<0.000000e+00> : vector<16x4xf32>
    %116 = vector.multi_reduction <add>, %115, %cst_44 [0] : vector<1x16x4xf32> to vector<16x4xf32>
    %cst_45 = arith.constant 1.000000e+00 : f32
    %117 = vector.broadcast %cst_45 : f32 to vector<16x4xf32>
    %118 = arith.divf %116, %117 : vector<16x4xf32>
    %c0_46 = arith.constant 0 : index
    %c0_47 = arith.constant 0 : index
    %119 = vector.load %arg11[%c0_46, %c0_47] : memref<1x4xf32, #tpu.memory_space<vmem>>, vector<1x4xf32>
    %120 = vector.broadcast %119 : vector<1x4xf32> to vector<16x4xf32>
    %121 = arith.addf %118, %120 : vector<16x4xf32>
    %c0_48 = arith.constant 0 : index
    %c0_49 = arith.constant 0 : index
    %122 = vector.load %arg2[%c0_48, %c0_49] : memref<2x16xf32, #tpu.memory_space<vmem>>, vector<2x16xf32>
    %cst_50 = arith.constant dense<0.000000e+00> : vector<2x4xf32>
    %123 = tpu.matmul %122, %121, %cst_50 {dimension_numbers = #tpu.dot_dimension_numbers<[1], [0], [0], [1], [0, 0, 1, 1], [], []>} : vector<2x16xf32>, vector<16x4xf32>, vector<2x4xf32> -> vector<2x4xf32>
    %cst_51 = arith.constant 0.000000e+00 : f32
    %124 = vector.broadcast %cst_51 : f32 to vector<2x4xf32>
    %125 = arith.subf %124, %123 : vector<2x4xf32>
    %126 = math.exp %125 : vector<2x4xf32>
    %cst_52 = arith.constant 1.000000e+00 : f32
    %127 = vector.broadcast %cst_52 : f32 to vector<2x4xf32>
    %128 = arith.addf %127, %126 : vector<2x4xf32>
    %129 = tpu.reciprocal %128 {approx = true} : vector<2x4xf32> -> vector<2x4xf32>
    %c0_53 = arith.constant 0 : index
    %c0_54 = arith.constant 0 : index
    %130 = vector.load %arg12[%c0_53, %c0_54] : memref<2x4xf32, #tpu.memory_space<vmem>>, vector<2x4xf32>
    tpu.vector_store %arg12[%c0_53, %c0_54], %129 {strides = array<i32>} : memref<2x4xf32, #tpu.memory_space<vmem>>, vector<2x4xf32>,
    return
  }
}

</mosaic_0001>

<llo_original>
// kernel: gatnet_forward.1
$region0: #{gatnet_forward.1}
  #allocation0 [shape = 'u32[]', space=smem, size = 0x4, offset = 0x4, fixed_abs, tag = 'smem constant byte address 0x4 - core index']
  #allocation1 [shape = 'u32[72,128]{1,0:T(1,128)}', space=vmem, size = 0x9000, scoped, tag = 'internal scratch']
  %s0 = inlined_call_operand.vmem [shape: f32[16,8], index: 0, kind: input, shape index: {}]
  %s1 = inlined_call_operand.vmem [shape: f32[16,16], index: 1, kind: input, shape index: {}]
  %s2 = inlined_call_operand.vmem [shape: f32[2,16], index: 2, kind: input, shape index: {}]
  %s3 = inlined_call_operand.vmem [shape: f32[8,64], index: 3, kind: input, shape index: {}]
  %s4 = inlined_call_operand.vmem [shape: f32[64,8], index: 4, kind: input, shape index: {}]
  %s5 = inlined_call_operand.vmem [shape: f32[1,64], index: 5, kind: input, shape index: {}]
  %s6 = inlined_call_operand.vmem [shape: f32[64,128], index: 6, kind: input, shape index: {}]
  %s7 = inlined_call_operand.vmem [shape: f32[128,8], index: 7, kind: input, shape index: {}]
  %s8 = inlined_call_operand.vmem [shape: f32[1,128], index: 8, kind: input, shape index: {}]
  %s9 = inlined_call_operand.vmem [shape: f32[128,4], index: 9, kind: input, shape index: {}]
  %s10 = inlined_call_operand.vmem [shape: f32[4,2], index: 10, kind: input, shape index: {}]
  %s11 = inlined_call_operand.vmem [shape: f32[1,4], index: 11, kind: input, shape index: {}]
  %s12 = inlined_call_operand.hbm [shape: f32[2,4], index: 12, kind: output, shape index: {}]
  %s13 = sld [smem:[#allocation0]]
  $region58: #{gatnet_forward.1} parent=0
    _
  %s15 = ssub.s32 1, %s13
  %s16 = scalar_select 0, %s15, %s13
  $region1: #{gatnet_forward.1} parent=0
    #allocation2 [shape = 'u8[1024]{0}', space=vmem, size = 0x400, scoped, tag = 'output window, operand 0, single buffered']
    #allocation3 [shape = 's32[1]{0}', space=sflag, size = 0x4, scoped, tag = 'scoped memory for gatnet_forward.1']
    %17 = vsyncpa [#allocation3], 0
    // Predicated region
    $region2: #{gatnet_forward.1} parent=1 // pred_check
      _
    $region3: #{gatnet_forward.1} parent=1 // pred_check_branch
      %19 = sbr.rel (0) target = $region5
    $region4: #{gatnet_forward.1} parent=1 // pred_region
      _
    $region5: #{gatnet_forward.1} parent=1 // pred_fallthru
      _
    // Predicated region
    $region6: #{gatnet_forward.1} parent=1 // pred_check
      _
    $region7: #{gatnet_forward.1} parent=1 // pred_check_branch
      %21 = sbr.rel (0) target = $region9
    $region8: #{gatnet_forward.1} parent=1 // pred_region
      _
    $region9: #{gatnet_forward.1} parent=1 // pred_fallthru
      _
    // Predicated region
    $region10: #{gatnet_forward.1} parent=1 // pred_check
      _
    $region11: #{gatnet_forward.1} parent=1 // pred_check_branch
      %23 = sbr.rel (0) target = $region13
    $region12: #{gatnet_forward.1} parent=1 // pred_region
      _
    $region13: #{gatnet_forward.1} parent=1 // pred_fallthru
      _
    // Predicated region
    $region14: #{gatnet_forward.1} parent=1 // pred_check
      _
    $region15: #{gatnet_forward.1} parent=1 // pred_check_branch
      %25 = sbr.rel (0) target = $region17
    $region16: #{gatnet_forward.1} parent=1 // pred_region
      _
    $region17: #{gatnet_forward.1} parent=1 // pred_fallthru
      _
    // Predicated region
    $region18: #{gatnet_forward.1} parent=1 // pred_check
      _
    $region19: #{gatnet_forward.1} parent=1 // pred_check_branch
      %27 = sbr.rel (0) target = $region21
    $region20: #{gatnet_forward.1} parent=1 // pred_region
      _
    $region21: #{gatnet_forward.1} parent=1 // pred_fallthru
      _
    // Predicated region
    $region22: #{gatnet_forward.1} parent=1 // pred_check
      _
    $region23: #{gatnet_forward.1} parent=1 // pred_check_branch
      %29 = sbr.rel (0) target = $region25
    $region24: #{gatnet_forward.1} parent=1 // pred_region
      _
    $region25: #{gatnet_forward.1} parent=1 // pred_fallthru
      _
    // Predicated region
    $region26: #{gatnet_forward.1} parent=1 // pred_check
      _
    $region27: #{gatnet_forward.1} parent=1 // pred_check_branch
      %31 = sbr.rel (0) target = $region29
    $region28: #{gatnet_forward.1} parent=1 // pred_region
      _
    $region29: #{gatnet_forward.1} parent=1 // pred_fallthru
      _
    // Predicated region
    $region30: #{gatnet_forward.1} parent=1 // pred_check
      _
    $region31: #{gatnet_forward.1} parent=1 // pred_check_branch
      %33 = sbr.rel (0) target = $region33
    $region32: #{gatnet_forward.1} parent=1 // pred_region
      _
    $region33: #{gatnet_forward.1} parent=1 // pred_fallthru
      _
    // Predicated region
    $region34: #{gatnet_forward.1} parent=1 // pred_check
      _
    $region35: #{gatnet_forward.1} parent=1 // pred_check_branch
      %35 = sbr.rel (0) target = $region37
    $region36: #{gatnet_forward.1} parent=1 // pred_region
      _
    $region37: #{gatnet_forward.1} parent=1 // pred_fallthru
      _
    // Predicated region
    $region38: #{gatnet_forward.1} parent=1 // pred_check
      _
    $region39: #{gatnet_forward.1} parent=1 // pred_check_branch
      %37 = sbr.rel (0) target = $region41
    $region40: #{gatnet_forward.1} parent=1 // pred_region
      _
    $region41: #{gatnet_forward.1} parent=1 // pred_fallthru
      _
    // Predicated region
    $region42: #{gatnet_forward.1} parent=1 // pred_check
      _
    $region43: #{gatnet_forward.1} parent=1 // pred_check_branch
      %39 = sbr.rel (0) target = $region45
    $region44: #{gatnet_forward.1} parent=1 // pred_region
      _
    $region45: #{gatnet_forward.1} parent=1 // pred_fallthru
      _
    // Predicated region
    $region46: #{gatnet_forward.1} parent=1 // pred_check
      _
    $region47: #{gatnet_forward.1} parent=1 // pred_check_branch
      %41 = sbr.rel (0) target = $region49
    $region48: #{gatnet_forward.1} parent=1 // pred_region
      _
    $region49: #{gatnet_forward.1} parent=1 // pred_fallthru
      _
    %v42 = vld [vmem:[%s1] sm:$0xff]
    %v43 = vld [vmem:[%s1 + $0x8] sm:$0xff]
    %vm44 = vcmp.gt.f32.partialorder %v42, 0.0
    %vm45 = vcmp.gt.f32.partialorder %v43, 0.0
    %v46 = vsel %vm44, 0.0, -1e+30
    %v47 = vsel %vm45, 0.0, -1e+30
    %v48 = vld [vmem:[%s0] sm:$0xff]
    %v49 = vld [vmem:[%s0 + $0x8] sm:$0xff]
    %v50 = vld [vmem:[%s3] sm:$0xff]
    %vm51 = vcmask 64512
    %v53 = vsel %vm51, %v48, 0
    %v56 = vsel %vm51, %v49, 0
    %58 = vmatpush.msra.mxu0 0.0
    %59 = vmatpush.msra.mxu0 0.0
    %60 = vmatpush.msra.mxu0 0.0
    %61 = vmatpush.msra.mxu0 0.0
    %62 = vmatpush.msra.mxu0 0.0
    %63 = vmatpush.msra.mxu0 0.0
    %64 = vmatpush.msra.mxu0 0.0
    %65 = vmatpush.msra.mxu0 0.0
    %66 = vmatpush.msra.mxu0 0.0
    %67 = vmatpush.msra.mxu0 0.0
    %68 = vmatpush.msra.mxu0 0.0
    %69 = vmatpush.msra.mxu0 0.0
    %70 = vmatpush.msra.mxu0 0.0
    %71 = vmatpush.msra.mxu0 0.0
    %72 = vmatpush.msra.mxu0 0.0
    %73 = vmatpush.msra.mxu0 %v50
    %74 = vmatmul.f32.gmra.mxu0 %v53
    %v75 = vpop.f32.mrf.mxu0
    %v76 = vadd.f32 0.0, %v75
    %77 = vmatmul.f32.gmra.mxu0 %v56
    %v78 = vpop.f32.mrf.mxu0
    %v79 = vadd.f32 0.0, %v78
    %80 = vdwg.mxu0
    %v81 = vld [vmem:[%s4] sm:$0xff]
    %v82 = vld [vmem:[%s4 + $0x8] sm:$0xff]
    %v83 = vld [vmem:[%s4 + $0x10] sm:$0xff]
    %v84 = vld [vmem:[%s4 + $0x18] sm:$0xff]
    %v85 = vld [vmem:[%s4 + $0x20] sm:$0xff]
    %v86 = vld [vmem:[%s4 + $0x28] sm:$0xff]
    %v87 = vld [vmem:[%s4 + $0x30] sm:$0xff]
    %v88 = vld [vmem:[%s4 + $0x38] sm:$0xff]
    %vm89 = vcmask 523264
    %v91 = vsel %vm89, %v76, 0
    %v94 = vsel %vm89, %v79, 0
    %96 = vmatpush.msra.mxu0 0.0
    %97 = vmatpush.msra.mxu0 0.0
    %98 = vmatpush.msra.mxu0 0.0
    %99 = vmatpush.msra.mxu0 0.0
    %100 = vmatpush.msra.mxu0 0.0
    %101 = vmatpush.msra.mxu0 0.0
    %102 = vmatpush.msra.mxu0 0.0
    %103 = vmatpush.msra.mxu0 0.0
    %104 = vmatpush.msra.mxu0 %v88
    %105 = vmatpush.msra.mxu0 %v87
    %106 = vmatpush.msra.mxu0 %v86
    %107 = vmatpush.msra.mxu0 %v85
    %108 = vmatpush.msra.mxu0 %v84
    %109 = vmatpush.msra.mxu0 %v83
    %110 = vmatpush.msra.mxu0 %v82
    %111 = vmatpush.msra.mxu0 %v81
    %112 = vmatmul.f32.gmra.mxu0 %v91
    %v113 = vpop.f32.mrf.mxu0
    %v114 = vadd.f32 0.0, %v113
    %115 = vmatmul.f32.gmra.mxu0 %v94
    %v116 = vpop.f32.mrf.mxu0
    %v117 = vadd.f32 0.0, %v116
    %118 = vdwg.mxu0
    %119 = vxpose.xlu0.b32.start [1/16] %v114, 128
    %120 = vxpose.xlu0.b32.cont [2/16] %v117, 128
    %121 = vxpose.xlu0.b32.cont [3/16] 0.0, 128
    %122 = vxpose.xlu0.b32.cont [4/16] 0.0, 128
    %123 = vxpose.xlu0.b32.cont [5/16] 0.0, 128
    %124 = vxpose.xlu0.b32.cont [6/16] 0.0, 128
    %125 = vxpose.xlu0.b32.cont [7/16] 0.0, 128
    %126 = vxpose.xlu0.b32.cont [8/16] 0.0, 128
    %127 = vxpose.xlu0.b32.cont [9/16] 0.0, 128
    %128 = vxpose.xlu0.b32.cont [10/16] 0.0, 128
    %129 = vxpose.xlu0.b32.cont [11/16] 0.0, 128
    %130 = vxpose.xlu0.b32.cont [12/16] 0.0, 128
    %131 = vxpose.xlu0.b32.cont [13/16] 0.0, 128
    %132 = vxpose.xlu0.b32.cont [14/16] 0.0, 128
    %133 = vxpose.xlu0.b32.cont [15/16] 0.0, 128
    %134 = vxpose.xlu0.b32.end [16/16] 0.0, 128
    %v135 = vpop.trf.xlu0
    %v136 = vpop.trf.xlu0
    %v137 = vpop.trf.xlu0
    %v138 = vpop.trf.xlu0
    %v139 = vpop.trf.xlu0
    %v140 = vpop.trf.xlu0
    %v141 = vpop.trf.xlu0
    %v142 = vpop.trf.xlu0
    %v143 = vpop.trf.xlu0
    %v144 = vpop.trf.xlu0
    %v145 = vpop.trf.xlu0
    %v146 = vpop.trf.xlu0
    %v147 = vpop.trf.xlu0
    %v148 = vpop.trf.xlu0
    %v149 = vpop.trf.xlu0
    %v150 = vpop.trf.xlu0
    %v151 = vperm.slane %v135, 4
    %v152 = vlaneseq
    %v153 = vshrl.u32 %v152, 7
    %155 = vset.pattern.permute.xlu0 %v153
    %156 = vperm.xlu0 %155, %v151
    %v157 = vpop.permute.xlu0 %156
    %v158 = vlaneseq
    %v159 = vshrl.u32 %v158, 7
    %v160 = vadd.s32 %v159, 8
    %161 = vset.pattern.permute.xlu0 %v160
    %162 = vperm.xlu0 %161, %v151
    %v163 = vpop.permute.xlu0 %162
    %v164 = vperm.slane %v135, 5
    %v165 = vlaneseq
    %v166 = vshrl.u32 %v165, 7
    %168 = vset.pattern.permute.xlu0 %v166
    %169 = vperm.xlu0 %168, %v164
    %v170 = vpop.permute.xlu0 %169
    %v171 = vlaneseq
    %v172 = vshrl.u32 %v171, 7
    %v173 = vadd.s32 %v172, 8
    %174 = vset.pattern.permute.xlu0 %v173
    %175 = vperm.xlu0 %174, %v164
    %v176 = vpop.permute.xlu0 %175
    %v177 = vperm.slane %v135, 6
    %v178 = vlaneseq
    %v179 = vshrl.u32 %v178, 7
    %181 = vset.pattern.permute.xlu0 %v179
    %182 = vperm.xlu0 %181, %v177
    %v183 = vpop.permute.xlu0 %182
    %v184 = vlaneseq
    %v185 = vshrl.u32 %v184, 7
    %v186 = vadd.s32 %v185, 8
    %187 = vset.pattern.permute.xlu0 %v186
    %188 = vperm.xlu0 %187, %v177
    %v189 = vpop.permute.xlu0 %188
    %v190 = vperm.slane %v135, 7
    %v191 = vlaneseq
    %v192 = vshrl.u32 %v191, 7
    %194 = vset.pattern.permute.xlu0 %v192
    %195 = vperm.xlu0 %194, %v190
    %v196 = vpop.permute.xlu0 %195
    %v197 = vlaneseq
    %v198 = vshrl.u32 %v197, 7
    %v199 = vadd.s32 %v198, 8
    %200 = vset.pattern.permute.xlu0 %v199
    %201 = vperm.xlu0 %200, %v190
    %v202 = vpop.permute.xlu0 %201
    %v204 = vrot.slane %v135, 1
    %v205 = vrot.slane %v135, 2
    %v206 = vrot.slane %v135, 3
    %v207 = vperm.slane %v135, 0
    %v208 = vperm.slane %v204, 0
    %v209 = vperm.slane %v205, 0
    %v210 = vperm.slane %v206, 0
    %v215 = vadd.f32 %v157, %v207
    %v216 = vadd.f32 %v163, %v207
    %v217 = vadd.f32 %v170, %v208
    %v218 = vadd.f32 %v176, %v208
    %v219 = vadd.f32 %v183, %v209
    %v220 = vadd.f32 %v189, %v209
    %v221 = vadd.f32 %v196, %v210
    %v222 = vadd.f32 %v202, %v210
    %vm223 = vcmp.gt.f32.partialorder %v215, 0.0
    %vm224 = vcmp.gt.f32.partialorder %v216, 0.0
    %vm225 = vcmp.gt.f32.partialorder %v217, 0.0
    %vm226 = vcmp.gt.f32.partialorder %v218, 0.0
    %vm227 = vcmp.gt.f32.partialorder %v219, 0.0
    %vm228 = vcmp.gt.f32.partialorder %v220, 0.0
    %vm229 = vcmp.gt.f32.partialorder %v221, 0.0
    %vm230 = vcmp.gt.f32.partialorder %v222, 0.0
    %v231 = vmul.f32 %v215, 0.2
    %v232 = vmul.f32 %v216, 0.2
    %v233 = vmul.f32 %v217, 0.2
    %v234 = vmul.f32 %v218, 0.2
    %v235 = vmul.f32 %v219, 0.2
    %v236 = vmul.f32 %v220, 0.2
    %v237 = vmul.f32 %v221, 0.2
    %v238 = vmul.f32 %v222, 0.2
    %v239 = vsel %vm223, %v215, %v231
    %v240 = vsel %vm224, %v216, %v232
    %v241 = vsel %vm225, %v217, %v233
    %v242 = vsel %vm226, %v218, %v234
    %v243 = vsel %vm227, %v219, %v235
    %v244 = vsel %vm228, %v220, %v236
    %v245 = vsel %vm229, %v221, %v237
    %v246 = vsel %vm230, %v222, %v238
    %v247 = vadd.f32 %v239, %v46
    %v248 = vadd.f32 %v240, %v47
    %v249 = vadd.f32 %v241, %v46
    %v250 = vadd.f32 %v242, %v47
    %v251 = vadd.f32 %v243, %v46
    %v252 = vadd.f32 %v244, %v47
    %v253 = vadd.f32 %v245, %v46
    %v254 = vadd.f32 %v246, %v47
    %vm255 = vcmask 130048
    %v256 = vsel %vm255, %v247, -inf
    %257 = vmax.xlane.f32.xlu0 %v256
    %v258 = vpop.xlane.xlu0 %257
    %v259 = vsel %vm255, %v248, -inf
    %260 = vmax.xlane.f32.xlu0 %v259
    %v261 = vpop.xlane.xlu0 %260
    %v262 = vsel %vm255, %v249, -inf
    %263 = vmax.xlane.f32.xlu0 %v262
    %v264 = vpop.xlane.xlu0 %263
    %v265 = vsel %vm255, %v250, -inf
    %266 = vmax.xlane.f32.xlu0 %v265
    %v267 = vpop.xlane.xlu0 %266
    %v268 = vsel %vm255, %v251, -inf
    %269 = vmax.xlane.f32.xlu0 %v268
    %v270 = vpop.xlane.xlu0 %269
    %v271 = vsel %vm255, %v252, -inf
    %272 = vmax.xlane.f32.xlu0 %v271
    %v273 = vpop.xlane.xlu0 %272
    %v274 = vsel %vm255, %v253, -inf
    %275 = vmax.xlane.f32.xlu0 %v274
    %v276 = vpop.xlane.xlu0 %275
    %v277 = vsel %vm255, %v254, -inf
    %278 = vmax.xlane.f32.xlu0 %v277
    %v279 = vpop.xlane.xlu0 %278
    %v280 = vsub.f32 %v247, %v258
    %v281 = vsub.f32 %v248, %v261
    %v282 = vsub.f32 %v249, %v264
    %v283 = vsub.f32 %v250, %v267
    %v284 = vsub.f32 %v251, %v270
    %v285 = vsub.f32 %v252, %v273
    %v286 = vsub.f32 %v253, %v276
    %v287 = vsub.f32 %v254, %v279
    %v288 = vmul.f32 %v280, 1.442695
    %v289 = vpow.pop %v288
    %v290 = vmul.f32 %v281, 1.442695
    %v291 = vpow.pop %v290
    %v292 = vmul.f32 %v282, 1.442695
    %v293 = vpow.pop %v292
    %v294 = vmul.f32 %v283, 1.442695
    %v295 = vpow.pop %v294
    %v296 = vmul.f32 %v284, 1.442695
    %v297 = vpow.pop %v296
    %v298 = vmul.f32 %v285, 1.442695
    %v299 = vpow.pop %v298
    %v300 = vmul.f32 %v286, 1.442695
    %v301 = vpow.pop %v300
    %v302 = vmul.f32 %v287, 1.442695
    %v303 = vpow.pop %v302
    %v304 = vsel %vm255, %v289, 0.0
    %305 = vadd.xlane.f32.xlu0 %v304
    %v306 = vpop.xlane.xlu0 %305
    %v307 = vsel %vm255, %v291, 0.0
    %308 = vadd.xlane.f32.xlu0 %v307
    %v309 = vpop.xlane.xlu0 %308
    %v310 = vsel %vm255, %v293, 0.0
    %311 = vadd.xlane.f32.xlu0 %v310
    %v312 = vpop.xlane.xlu0 %311
    %v313 = vsel %vm255, %v295, 0.0
    %314 = vadd.xlane.f32.xlu0 %v313
    %v315 = vpop.xlane.xlu0 %314
    %v316 = vsel %vm255, %v297, 0.0
    %317 = vadd.xlane.f32.xlu0 %v316
    %v318 = vpop.xlane.xlu0 %317
    %v319 = vsel %vm255, %v299, 0.0
    %320 = vadd.xlane.f32.xlu0 %v319
    %v321 = vpop.xlane.xlu0 %320
    %v322 = vsel %vm255, %v301, 0.0
    %323 = vadd.xlane.f32.xlu0 %v322
    %v324 = vpop.xlane.xlu0 %323
    %v325 = vsel %vm255, %v303, 0.0
    %326 = vadd.xlane.f32.xlu0 %v325
    %v327 = vpop.xlane.xlu0 %326
    %v328 = vrcp.pop %v306
    %v329 = vmul.f32 %v306, %v328
    %v330 = vsub.f32 1.0, %v329
    %v331 = vmul.f32 %v328, %v330
    %v332 = vadd.f32 %v328, %v331
    %vm333 = vweird.f32 %v306
    %vm334 = vweird.f32 %v328
    %vm335 = vmor %vm333, %vm334
    %v336 = vsel %vm335, %v328, %v332
    %v337 = vand.u32 2147483647, %v306
    %vm338 = vcmp.eq.f32.partialorder %v337, 8.507059e+37
    %v339 = vand.u32 %v306, 2147483648
    %v340 = vor.u32 1.1754944e-38, %v339
    %v341 = vsel %vm338, %v340, %v336
    %v342 = vmul.f32 %v289, %v341
    %v343 = vrcp.pop %v309
    %v344 = vmul.f32 %v309, %v343
    %v345 = vsub.f32 1.0, %v344
    %v346 = vmul.f32 %v343, %v345
    %v347 = vadd.f32 %v343, %v346
    %vm348 = vweird.f32 %v309
    %vm349 = vweird.f32 %v343
    %vm350 = vmor %vm348, %vm349
    %v351 = vsel %vm350, %v343, %v347
    %v352 = vand.u32 2147483647, %v309
    %vm353 = vcmp.eq.f32.partialorder %v352, 8.507059e+37
    %v354 = vand.u32 %v309, 2147483648
    %v355 = vor.u32 1.1754944e-38, %v354
    %v356 = vsel %vm353, %v355, %v351
    %v357 = vmul.f32 %v291, %v356
    %v358 = vrcp.pop %v312
    %v359 = vmul.f32 %v312, %v358
    %v360 = vsub.f32 1.0, %v359
    %v361 = vmul.f32 %v358, %v360
    %v362 = vadd.f32 %v358, %v361
    %vm363 = vweird.f32 %v312
    %vm364 = vweird.f32 %v358
    %vm365 = vmor %vm363, %vm364
    %v366 = vsel %vm365, %v358, %v362
    %v367 = vand.u32 2147483647, %v312
    %vm368 = vcmp.eq.f32.partialorder %v367, 8.507059e+37
    %v369 = vand.u32 %v312, 2147483648
    %v370 = vor.u32 1.1754944e-38, %v369
    %v371 = vsel %vm368, %v370, %v366
    %v372 = vmul.f32 %v293, %v371
    %v373 = vrcp.pop %v315
    %v374 = vmul.f32 %v315, %v373
    %v375 = vsub.f32 1.0, %v374
    %v376 = vmul.f32 %v373, %v375
    %v377 = vadd.f32 %v373, %v376
    %vm378 = vweird.f32 %v315
    %vm379 = vweird.f32 %v373
    %vm380 = vmor %vm378, %vm379
    %v381 = vsel %vm380, %v373, %v377
    %v382 = vand.u32 2147483647, %v315
    %vm383 = vcmp.eq.f32.partialorder %v382, 8.507059e+37
    %v384 = vand.u32 %v315, 2147483648
    %v385 = vor.u32 1.1754944e-38, %v384
    %v386 = vsel %vm383, %v385, %v381
    %v387 = vmul.f32 %v295, %v386
    %v388 = vrcp.pop %v318
    %v389 = vmul.f32 %v318, %v388
    %v390 = vsub.f32 1.0, %v389
    %v391 = vmul.f32 %v388, %v390
    %v392 = vadd.f32 %v388, %v391
    %vm393 = vweird.f32 %v318
    %vm394 = vweird.f32 %v388
    %vm395 = vmor %vm393, %vm394
    %v396 = vsel %vm395, %v388, %v392
    %v397 = vand.u32 2147483647, %v318
    %vm398 = vcmp.eq.f32.partialorder %v397, 8.507059e+37
    %v399 = vand.u32 %v318, 2147483648
    %v400 = vor.u32 1.1754944e-38, %v399
    %v401 = vsel %vm398, %v400, %v396
    %v402 = vmul.f32 %v297, %v401
    %v403 = vrcp.pop %v321
    %v404 = vmul.f32 %v321, %v403
    %v405 = vsub.f32 1.0, %v404
    %v406 = vmul.f32 %v403, %v405
    %v407 = vadd.f32 %v403, %v406
    %vm408 = vweird.f32 %v321
    %vm409 = vweird.f32 %v403
    %vm410 = vmor %vm408, %vm409
    %v411 = vsel %vm410, %v403, %v407
    %v412 = vand.u32 2147483647, %v321
    %vm413 = vcmp.eq.f32.partialorder %v412, 8.507059e+37
    %v414 = vand.u32 %v321, 2147483648
    %v415 = vor.u32 1.1754944e-38, %v414
    %v416 = vsel %vm413, %v415, %v411
    %v417 = vmul.f32 %v299, %v416
    %v418 = vrcp.pop %v324
    %v419 = vmul.f32 %v324, %v418
    %v420 = vsub.f32 1.0, %v419
    %v421 = vmul.f32 %v418, %v420
    %v422 = vadd.f32 %v418, %v421
    %vm423 = vweird.f32 %v324
    %vm424 = vweird.f32 %v418
    %vm425 = vmor %vm423, %vm424
    %v426 = vsel %vm425, %v418, %v422
    %v427 = vand.u32 2147483647, %v324
    %vm428 = vcmp.eq.f32.partialorder %v427, 8.507059e+37
    %v429 = vand.u32 %v324, 2147483648
    %v430 = vor.u32 1.1754944e-38, %v429
    %v431 = vsel %vm428, %v430, %v426
    %v432 = vmul.f32 %v301, %v431
    %v433 = vrcp.pop %v327
    %v434 = vmul.f32 %v327, %v433
    %v435 = vsub.f32 1.0, %v434
    %v436 = vmul.f32 %v433, %v435
    %v437 = vadd.f32 %v433, %v436
    %vm438 = vweird.f32 %v327
    %vm439 = vweird.f32 %v433
    %vm440 = vmor %vm438, %vm439
    %v441 = vsel %vm440, %v433, %v437
    %v442 = vand.u32 2147483647, %v327
    %vm443 = vcmp.eq.f32.partialorder %v442, 8.507059e+37
    %v444 = vand.u32 %v327, 2147483648
    %v445 = vor.u32 1.1754944e-38, %v444
    %v446 = vsel %vm443, %v445, %v441
    %v447 = vmul.f32 %v303, %v446
    %448 = vrot.lane.b32.xlu0 %v76, 112
    %v449 = vpop.permute.xlu0 %448
    %450 = vrot.lane.b32.xlu0 %v79, 112
    %v451 = vpop.permute.xlu0 %450
    %454 = vrot.lane.b32.xlu0 %v76, 96
    %v455 = vpop.permute.xlu0 %454
    %456 = vrot.lane.b32.xlu0 %v79, 96
    %v457 = vpop.permute.xlu0 %456
    %460 = vrot.lane.b32.xlu0 %v76, 80
    %v461 = vpop.permute.xlu0 %460
    %462 = vrot.lane.b32.xlu0 %v79, 80
    %v463 = vpop.permute.xlu0 %462
    %v466 = vrot.slane %v455, 4
    %vm467 = vcmask 1047556
    %v468 = vsel %vm467, %v466, %v76
    %v469 = vrot.slane %v76, 4
    %v470 = vsel %vm467, %v455, %v469
    %v472 = vunpack.c.l.s4 1983009808
    %v473 = vunpack.c.0.s8 %v472
    %v474 = vperm.slane %v468, %v473
    %v476 = vunpack.c.l.s4 1983009808
    %v477 = vunpack.c.0.s8 %v476
    %v478 = vperm.slane %v470, %v477
    %v479 = vrot.slane %v461, 4
    %v480 = vsel %vm467, %v479, %v449
    %v481 = vrot.slane %v449, 4
    %v482 = vsel %vm467, %v461, %v481
    %v484 = vunpack.c.l.s4 1983009808
    %v485 = vunpack.c.0.s8 %v484
    %v486 = vperm.slane %v480, %v485
    %v488 = vunpack.c.l.s4 1983009808
    %v489 = vunpack.c.0.s8 %v488
    %v490 = vperm.slane %v482, %v489
    %v491 = vrot.slane %v486, 4
    %v492 = vsel %vm467, %v491, %v474
    %v493 = vrot.slane %v474, 4
    %v494 = vsel %vm467, %v486, %v493
    %v496 = vunpack.c.l.s4 1934713408
    %v497 = vunpack.c.0.s8 %v496
    %v498 = vperm.slane %v492, %v497
    %v500 = vunpack.c.l.s4 1934713408
    %v501 = vunpack.c.0.s8 %v500
    %v502 = vperm.slane %v494, %v501
    %v503 = vrot.slane %v490, 4
    %v504 = vsel %vm467, %v503, %v478
    %v505 = vrot.slane %v478, 4
    %v506 = vsel %vm467, %v490, %v505
    %v508 = vunpack.c.l.s4 1934713408
    %v509 = vunpack.c.0.s8 %v508
    %v510 = vperm.slane %v504, %v509
    %v512 = vunpack.c.l.s4 1934713408
    %v513 = vunpack.c.0.s8 %v512
    %v514 = vperm.slane %v506, %v513
    %v515 = vrot.slane %v498, 4
    %v516 = vsel %vm467, 0.0, %v515
    %v517 = vrot.slane %v502, 4
    %v518 = vsel %vm467, 0.0, %v517
    %v519 = vrot.slane %v510, 4
    %v520 = vsel %vm467, 0.0, %v519
    %v521 = vrot.slane %v514, 4
    %v522 = vsel %vm467, 0.0, %v521
    %v523 = vrot.slane %v457, 4
    %v524 = vsel %vm467, %v523, %v79
    %v525 = vrot.slane %v79, 4
    %v526 = vsel %vm467, %v457, %v525
    %v528 = vunpack.c.l.s4 1983009808
    %v529 = vunpack.c.0.s8 %v528
    %v530 = vperm.slane %v524, %v529
    %v532 = vunpack.c.l.s4 1983009808
    %v533 = vunpack.c.0.s8 %v532
    %v534 = vperm.slane %v526, %v533
    %v535 = vrot.slane %v463, 4
    %v536 = vsel %vm467, %v535, %v451
    %v537 = vrot.slane %v451, 4
    %v538 = vsel %vm467, %v463, %v537
    %v540 = vunpack.c.l.s4 1983009808
    %v541 = vunpack.c.0.s8 %v540
    %v542 = vperm.slane %v536, %v541
    %v544 = vunpack.c.l.s4 1983009808
    %v545 = vunpack.c.0.s8 %v544
    %v546 = vperm.slane %v538, %v545
    %v547 = vrot.slane %v542, 4
    %v548 = vsel %vm467, %v547, %v530
    %v549 = vrot.slane %v530, 4
    %v550 = vsel %vm467, %v542, %v549
    %v552 = vunpack.c.l.s4 1934713408
    %v553 = vunpack.c.0.s8 %v552
    %v554 = vperm.slane %v548, %v553
    %v556 = vunpack.c.l.s4 1934713408
    %v557 = vunpack.c.0.s8 %v556
    %v558 = vperm.slane %v550, %v557
    %v559 = vrot.slane %v546, 4
    %v560 = vsel %vm467, %v559, %v534
    %v561 = vrot.slane %v534, 4
    %v562 = vsel %vm467, %v546, %v561
    %v564 = vunpack.c.l.s4 1934713408
    %v565 = vunpack.c.0.s8 %v564
    %v566 = vperm.slane %v560, %v565
    %v568 = vunpack.c.l.s4 1934713408
    %v569 = vunpack.c.0.s8 %v568
    %v570 = vperm.slane %v562, %v569
    %v571 = vrot.slane %v554, 4
    %v572 = vsel %vm467, 0.0, %v571
    %v573 = vrot.slane %v558, 4
    %v574 = vsel %vm467, 0.0, %v573
    %v575 = vrot.slane %v566, 4
    %v576 = vsel %vm467, 0.0, %v575
    %v577 = vrot.slane %v570, 4
    %v578 = vsel %vm467, 0.0, %v577
    %v579 = vsel %vm467, %v517, %v498
    %v581 = vunpack.c.l.s4 1983009808
    %v582 = vunpack.c.0.s8 %v581
    %v583 = vperm.slane %v579, %v582
    %v584 = vrot.slane %v518, 4
    %v585 = vsel %vm467, %v584, %v516
    %v587 = vunpack.c.l.s4 1983009808
    %v588 = vunpack.c.0.s8 %v587
    %v589 = vperm.slane %v585, %v588
    %v590 = vsel %vm467, %v521, %v510
    %v592 = vunpack.c.l.s4 1983009808
    %v593 = vunpack.c.0.s8 %v592
    %v594 = vperm.slane %v590, %v593
    %v595 = vrot.slane %v522, 4
    %v596 = vsel %vm467, %v595, %v520
    %v598 = vunpack.c.l.s4 1983009808
    %v599 = vunpack.c.0.s8 %v598
    %v600 = vperm.slane %v596, %v599
    %v601 = vrot.slane %v589, 4
    %v602 = vsel %vm467, %v601, %v583
    %v603 = vrot.slane %v583, 4
    %v604 = vsel %vm467, %v589, %v603
    %v606 = vunpack.c.l.s4 1934713408
    %v607 = vunpack.c.0.s8 %v606
    %v608 = vperm.slane %v602, %v607
    %v610 = vunpack.c.l.s4 1934713408
    %v611 = vunpack.c.0.s8 %v610
    %v612 = vperm.slane %v604, %v611
    %v613 = vrot.slane %v600, 4
    %v614 = vsel %vm467, %v613, %v594
    %v615 = vrot.slane %v594, 4
    %v616 = vsel %vm467, %v600, %v615
    %v618 = vunpack.c.l.s4 1934713408
    %v619 = vunpack.c.0.s8 %v618
    %v620 = vperm.slane %v614, %v619
    %v622 = vunpack.c.l.s4 1934713408
    %v623 = vunpack.c.0.s8 %v622
    %v624 = vperm.slane %v616, %v623
    %v625 = vrot.slane %v620, 4
    %v626 = vsel %vm467, %v625, %v608
    %v627 = vrot.slane %v608, 4
    %v628 = vsel %vm467, %v620, %v627
    %v629 = vrot.slane %v624, 4
    %v630 = vsel %vm467, %v629, %v612
    %v631 = vrot.slane %v612, 4
    %v632 = vsel %vm467, %v624, %v631
    %v633 = vsel %vm467, %v573, %v554
    %v635 = vunpack.c.l.s4 1983009808
    %v636 = vunpack.c.0.s8 %v635
    %v637 = vperm.slane %v633, %v636
    %v638 = vrot.slane %v574, 4
    %v639 = vsel %vm467, %v638, %v572
    %v641 = vunpack.c.l.s4 1983009808
    %v642 = vunpack.c.0.s8 %v641
    %v643 = vperm.slane %v639, %v642
    %v644 = vsel %vm467, %v577, %v566
    %v646 = vunpack.c.l.s4 1983009808
    %v647 = vunpack.c.0.s8 %v646
    %v648 = vperm.slane %v644, %v647
    %v649 = vrot.slane %v578, 4
    %v650 = vsel %vm467, %v649, %v576
    %v652 = vunpack.c.l.s4 1983009808
    %v653 = vunpack.c.0.s8 %v652
    %v654 = vperm.slane %v650, %v653
    %v655 = vrot.slane %v643, 4
    %v656 = vsel %vm467, %v655, %v637
    %v657 = vrot.slane %v637, 4
    %v658 = vsel %vm467, %v643, %v657
    %v660 = vunpack.c.l.s4 1934713408
    %v661 = vunpack.c.0.s8 %v660
    %v662 = vperm.slane %v656, %v661
    %v664 = vunpack.c.l.s4 1934713408
    %v665 = vunpack.c.0.s8 %v664
    %v666 = vperm.slane %v658, %v665
    %v667 = vrot.slane %v654, 4
    %v668 = vsel %vm467, %v667, %v648
    %v669 = vrot.slane %v648, 4
    %v670 = vsel %vm467, %v654, %v669
    %v672 = vunpack.c.l.s4 1934713408
    %v673 = vunpack.c.0.s8 %v672
    %v674 = vperm.slane %v668, %v673
    %v676 = vunpack.c.l.s4 1934713408
    %v677 = vunpack.c.0.s8 %v676
    %v678 = vperm.slane %v670, %v677
    %v679 = vrot.slane %v674, 4
    %v680 = vsel %vm467, %v679, %v662
    %v681 = vrot.slane %v662, 4
    %v682 = vsel %vm467, %v674, %v681
    %v683 = vrot.slane %v678, 4
    %v684 = vsel %vm467, %v683, %v666
    %v685 = vrot.slane %v666, 4
    %v686 = vsel %vm467, %v678, %v685
    %v688 = vsel %vm255, %v342, 0
    %v691 = vsel %vm255, %v357, 0
    %693 = vmatpush.msra.mxu0 0.0
    %694 = vmatpush.msra.mxu0 0.0
    %695 = vmatpush.msra.mxu0 0.0
    %696 = vmatpush.msra.mxu0 0.0
    %697 = vmatpush.msra.mxu0 0.0
    %698 = vmatpush.msra.mxu0 0.0
    %699 = vmatpush.msra.mxu0 0.0
    %700 = vmatpush.msra.mxu0 0.0
    %701 = vmatpush.msra.mxu0 0.0
    %702 = vmatpush.msra.mxu0 0.0
    %703 = vmatpush.msra.mxu0 0.0
    %704 = vmatpush.msra.mxu0 0.0
    %705 = vmatpush.msra.mxu0 0.0
    %706 = vmatpush.msra.mxu0 0.0
    %707 = vmatpush.msra.mxu0 %v680
    %708 = vmatpush.msra.mxu0 %v626
    %709 = vmatmul.f32.gmra.mxu0 %v688
    %v710 = vpop.f32.mrf.mxu0
    %v711 = vadd.f32 0.0, %v710
    %712 = vmatmul.f32.gmra.mxu0 %v691
    %v713 = vpop.f32.mrf.mxu0
    %v714 = vadd.f32 0.0, %v713
    %715 = vdwg.mxu0
    %v717 = vsel %vm255, %v372, 0
    %v720 = vsel %vm255, %v387, 0
    %722 = vmatpush.msra.mxu0 0.0
    %723 = vmatpush.msra.mxu0 0.0
    %724 = vmatpush.msra.mxu0 0.0
    %725 = vmatpush.msra.mxu0 0.0
    %726 = vmatpush.msra.mxu0 0.0
    %727 = vmatpush.msra.mxu0 0.0
    %728 = vmatpush.msra.mxu0 0.0
    %729 = vmatpush.msra.mxu0 0.0
    %730 = vmatpush.msra.mxu0 0.0
    %731 = vmatpush.msra.mxu0 0.0
    %732 = vmatpush.msra.mxu0 0.0
    %733 = vmatpush.msra.mxu0 0.0
    %734 = vmatpush.msra.mxu0 0.0
    %735 = vmatpush.msra.mxu0 0.0
    %736 = vmatpush.msra.mxu0 %v682
    %737 = vmatpush.msra.mxu0 %v628
    %738 = vmatmul.f32.gmra.mxu0 %v717
    %v739 = vpop.f32.mrf.mxu0
    %v740 = vadd.f32 0.0, %v739
    %741 = vmatmul.f32.gmra.mxu0 %v720
    %v742 = vpop.f32.mrf.mxu0
    %v743 = vadd.f32 0.0, %v742
    %744 = vdwg.mxu0
    %v746 = vsel %vm255, %v402, 0
    %v749 = vsel %vm255, %v417, 0
    %751 = vmatpush.msra.mxu0 0.0
    %752 = vmatpush.msra.mxu0 0.0
    %753 = vmatpush.msra.mxu0 0.0
    %754 = vmatpush.msra.mxu0 0.0
    %755 = vmatpush.msra.mxu0 0.0
    %756 = vmatpush.msra.mxu0 0.0
    %757 = vmatpush.msra.mxu0 0.0
    %758 = vmatpush.msra.mxu0 0.0
    %759 = vmatpush.msra.mxu0 0.0
    %760 = vmatpush.msra.mxu0 0.0
    %761 = vmatpush.msra.mxu0 0.0
    %762 = vmatpush.msra.mxu0 0.0
    %763 = vmatpush.msra.mxu0 0.0
    %764 = vmatpush.msra.mxu0 0.0
    %765 = vmatpush.msra.mxu0 %v684
    %766 = vmatpush.msra.mxu0 %v630
    %767 = vmatmul.f32.gmra.mxu0 %v746
    %v768 = vpop.f32.mrf.mxu0
    %v769 = vadd.f32 0.0, %v768
    %770 = vmatmul.f32.gmra.mxu0 %v749
    %v771 = vpop.f32.mrf.mxu0
    %v772 = vadd.f32 0.0, %v771
    %773 = vdwg.mxu0
    %v775 = vsel %vm255, %v432, 0
    %v778 = vsel %vm255, %v447, 0
    %780 = vmatpush.msra.mxu0 0.0
    %781 = vmatpush.msra.mxu0 0.0
    %782 = vmatpush.msra.mxu0 0.0
    %783 = vmatpush.msra.mxu0 0.0
    %784 = vmatpush.msra.mxu0 0.0
    %785 = vmatpush.msra.mxu0 0.0
    %786 = vmatpush.msra.mxu0 0.0
    %787 = vmatpush.msra.mxu0 0.0
    %788 = vmatpush.msra.mxu0 0.0
    %789 = vmatpush.msra.mxu0 0.0
    %790 = vmatpush.msra.mxu0 0.0
    %791 = vmatpush.msra.mxu0 0.0
    %792 = vmatpush.msra.mxu0 0.0
    %793 = vmatpush.msra.mxu0 0.0
    %794 = vmatpush.msra.mxu0 %v686
    %795 = vmatpush.msra.mxu0 %v632
    %796 = vmatmul.f32.gmra.mxu0 %v775
    %v797 = vpop.f32.mrf.mxu0
    %v798 = vadd.f32 0.0, %v797
    %799 = vmatmul.f32.gmra.mxu0 %v778
    %v800 = vpop.f32.mrf.mxu0
    %v801 = vadd.f32 0.0, %v800
    %802 = vdwg.mxu0
    %v803 = vrot.slane %v769, 4
    %v804 = vsel %vm467, %v803, %v711
    %v805 = vrot.slane %v711, 4
    %v806 = vsel %vm467, %v769, %v805
    %v808 = vunpack.c.l.s4 1983009808
    %v809 = vunpack.c.0.s8 %v808
    %v810 = vperm.slane %v804, %v809
    %v812 = vunpack.c.l.s4 1983009808
    %v813 = vunpack.c.0.s8 %v812
    %v814 = vperm.slane %v806, %v813
    %v815 = vrot.slane %v798, 4
    %v816 = vsel %vm467, %v815, %v740
    %v817 = vrot.slane %v740, 4
    %v818 = vsel %vm467, %v798, %v817
    %v820 = vunpack.c.l.s4 1983009808
    %v821 = vunpack.c.0.s8 %v820
    %v822 = vperm.slane %v816, %v821
    %v824 = vunpack.c.l.s4 1983009808
    %v825 = vunpack.c.0.s8 %v824
    %v826 = vperm.slane %v818, %v825
    %v827 = vrot.slane %v822, 4
    %v828 = vsel %vm467, %v827, %v810
    %v829 = vrot.slane %v810, 4
    %v830 = vsel %vm467, %v822, %v829
    %v832 = vunpack.c.l.s4 1934713408
    %v833 = vunpack.c.0.s8 %v832
    %v834 = vperm.slane %v828, %v833
    %v836 = vunpack.c.l.s4 1934713408
    %v837 = vunpack.c.0.s8 %v836
    %v838 = vperm.slane %v830, %v837
    %v839 = vrot.slane %v826, 4
    %v840 = vsel %vm467, %v839, %v814
    %v841 = vrot.slane %v814, 4
    %v842 = vsel %vm467, %v826, %v841
    %v844 = vunpack.c.l.s4 1934713408
    %v845 = vunpack.c.0.s8 %v844
    %v846 = vperm.slane %v840, %v845
    %v848 = vunpack.c.l.s4 1934713408
    %v849 = vunpack.c.0.s8 %v848
    %v850 = vperm.slane %v842, %v849
    %v851 = vrot.slane %v834, 4
    %v852 = vsel %vm467, 0.0, %v851
    %v853 = vrot.slane %v838, 4
    %v854 = vsel %vm467, 0.0, %v853
    %v855 = vrot.slane %v846, 4
    %v856 = vsel %vm467, 0.0, %v855
    %v857 = vrot.slane %v850, 4
    %v858 = vsel %vm467, 0.0, %v857
    %v859 = vrot.slane %v772, 4
    %v860 = vsel %vm467, %v859, %v714
    %v861 = vrot.slane %v714, 4
    %v862 = vsel %vm467, %v772, %v861
    %v864 = vunpack.c.l.s4 1983009808
    %v865 = vunpack.c.0.s8 %v864
    %v866 = vperm.slane %v860, %v865
    %v868 = vunpack.c.l.s4 1983009808
    %v869 = vunpack.c.0.s8 %v868
    %v870 = vperm.slane %v862, %v869
    %v871 = vrot.slane %v801, 4
    %v872 = vsel %vm467, %v871, %v743
    %v873 = vrot.slane %v743, 4
    %v874 = vsel %vm467, %v801, %v873
    %v876 = vunpack.c.l.s4 1983009808
    %v877 = vunpack.c.0.s8 %v876
    %v878 = vperm.slane %v872, %v877
    %v880 = vunpack.c.l.s4 1983009808
    %v881 = vunpack.c.0.s8 %v880
    %v882 = vperm.slane %v874, %v881
    %v883 = vrot.slane %v878, 4
    %v884 = vsel %vm467, %v883, %v866
    %v885 = vrot.slane %v866, 4
    %v886 = vsel %vm467, %v878, %v885
    %v888 = vunpack.c.l.s4 1934713408
    %v889 = vunpack.c.0.s8 %v888
    %v890 = vperm.slane %v884, %v889
    %v892 = vunpack.c.l.s4 1934713408
    %v893 = vunpack.c.0.s8 %v892
    %v894 = vperm.slane %v886, %v893
    %v895 = vrot.slane %v882, 4
    %v896 = vsel %vm467, %v895, %v870
    %v897 = vrot.slane %v870, 4
    %v898 = vsel %vm467, %v882, %v897
    %v900 = vunpack.c.l.s4 1934713408
    %v901 = vunpack.c.0.s8 %v900
    %v902 = vperm.slane %v896, %v901
    %v904 = vunpack.c.l.s4 1934713408
    %v905 = vunpack.c.0.s8 %v904
    %v906 = vperm.slane %v898, %v905
    %v907 = vrot.slane %v890, 4
    %v908 = vsel %vm467, 0.0, %v907
    %v909 = vrot.slane %v894, 4
    %v910 = vsel %vm467, 0.0, %v909
    %v911 = vrot.slane %v902, 4
    %v912 = vsel %vm467, 0.0, %v911
    %v913 = vrot.slane %v906, 4
    %v914 = vsel %vm467, 0.0, %v913
    %v915 = vsel %vm467, %v853, %v834
    %v917 = vunpack.c.l.s4 1983009808
    %v918 = vunpack.c.0.s8 %v917
    %v919 = vperm.slane %v915, %v918
    %v920 = vrot.slane %v854, 4
    %v921 = vsel %vm467, %v920, %v852
    %v923 = vunpack.c.l.s4 1983009808
    %v924 = vunpack.c.0.s8 %v923
    %v925 = vperm.slane %v921, %v924
    %v926 = vsel %vm467, %v857, %v846
    %v928 = vunpack.c.l.s4 1983009808
    %v929 = vunpack.c.0.s8 %v928
    %v930 = vperm.slane %v926, %v929
    %v931 = vrot.slane %v858, 4
    %v932 = vsel %vm467, %v931, %v856
    %v934 = vunpack.c.l.s4 1983009808
    %v935 = vunpack.c.0.s8 %v934
    %v936 = vperm.slane %v932, %v935
    %v937 = vrot.slane %v925, 4
    %v938 = vsel %vm467, %v937, %v919
    %v939 = vrot.slane %v919, 4
    %v940 = vsel %vm467, %v925, %v939
    %v942 = vunpack.c.l.s4 1934713408
    %v943 = vunpack.c.0.s8 %v942
    %v944 = vperm.slane %v938, %v943
    %v946 = vunpack.c.l.s4 1934713408
    %v947 = vunpack.c.0.s8 %v946
    %v948 = vperm.slane %v940, %v947
    %v949 = vrot.slane %v936, 4
    %v950 = vsel %vm467, %v949, %v930
    %v951 = vrot.slane %v930, 4
    %v952 = vsel %vm467, %v936, %v951
    %v954 = vunpack.c.l.s4 1934713408
    %v955 = vunpack.c.0.s8 %v954
    %v956 = vperm.slane %v950, %v955
    %v958 = vunpack.c.l.s4 1934713408
    %v959 = vunpack.c.0.s8 %v958
    %v960 = vperm.slane %v952, %v959
    %v961 = vrot.slane %v956, 4
    %v962 = vsel %vm467, %v961, %v944
    %v963 = vrot.slane %v944, 4
    %v964 = vsel %vm467, %v956, %v963
    %v965 = vrot.slane %v960, 4
    %v966 = vsel %vm467, %v965, %v948
    %v967 = vrot.slane %v948, 4
    %v968 = vsel %vm467, %v960, %v967
    %v969 = vsel %vm467, %v909, %v890
    %v971 = vunpack.c.l.s4 1983009808
    %v972 = vunpack.c.0.s8 %v971
    %v973 = vperm.slane %v969, %v972
    %v974 = vrot.slane %v910, 4
    %v975 = vsel %vm467, %v974, %v908
    %v977 = vunpack.c.l.s4 1983009808
    %v978 = vunpack.c.0.s8 %v977
    %v979 = vperm.slane %v975, %v978
    %v980 = vsel %vm467, %v913, %v902
    %v982 = vunpack.c.l.s4 1983009808
    %v983 = vunpack.c.0.s8 %v982
    %v984 = vperm.slane %v980, %v983
    %v985 = vrot.slane %v914, 4
    %v986 = vsel %vm467, %v985, %v912
    %v988 = vunpack.c.l.s4 1983009808
    %v989 = vunpack.c.0.s8 %v988
    %v990 = vperm.slane %v986, %v989
    %v991 = vrot.slane %v979, 4
    %v992 = vsel %vm467, %v991, %v973
    %v993 = vrot.slane %v973, 4
    %v994 = vsel %vm467, %v979, %v993
    %v996 = vunpack.c.l.s4 1934713408
    %v997 = vunpack.c.0.s8 %v996
    %v998 = vperm.slane %v992, %v997
    %v1000 = vunpack.c.l.s4 1934713408
    %v1001 = vunpack.c.0.s8 %v1000
    %v1002 = vperm.slane %v994, %v1001
    %v1003 = vrot.slane %v990, 4
    %v1004 = vsel %vm467, %v1003, %v984
    %v1005 = vrot.slane %v984, 4
    %v1006 = vsel %vm467, %v990, %v1005
    %v1008 = vunpack.c.l.s4 1934713408
    %v1009 = vunpack.c.0.s8 %v1008
    %v1010 = vperm.slane %v1004, %v1009
    %v1012 = vunpack.c.l.s4 1934713408
    %v1013 = vunpack.c.0.s8 %v1012
    %v1014 = vperm.slane %v1006, %v1013
    %v1015 = vrot.slane %v1010, 4
    %v1016 = vsel %vm467, %v1015, %v998
    %v1017 = vrot.slane %v998, 4
    %v1018 = vsel %vm467, %v1010, %v1017
    %v1019 = vrot.slane %v1014, 4
    %v1020 = vsel %vm467, %v1019, %v1002
    %v1021 = vrot.slane %v1002, 4
    %v1022 = vsel %vm467, %v1014, %v1021
    %1025 = vrot.lane.b32.xlu0 %v964, 16
    %v1026 = vpop.permute.xlu0 %1025
    %1027 = vrot.lane.b32.xlu0 %v1018, 16
    %v1028 = vpop.permute.xlu0 %1027
    %1033 = vrot.lane.b32.xlu0 %v966, 32
    %v1034 = vpop.permute.xlu0 %1033
    %1035 = vrot.lane.b32.xlu0 %v1020, 32
    %v1036 = vpop.permute.xlu0 %1035
    %1041 = vrot.lane.b32.xlu0 %v968, 48
    %v1042 = vpop.permute.xlu0 %1041
    %1043 = vrot.lane.b32.xlu0 %v1022, 48
    %v1044 = vpop.permute.xlu0 %1043
    %v1047 = vsel %vm255, %v962, %v1026
    %v1048 = vsel %vm255, %v1016, %v1028
    %vm1049 = vcmask 261120
    %v1050 = vsel %vm1049, %v1047, %v1034
    %v1051 = vsel %vm1049, %v1048, %v1036
    %vm1052 = vcmask 392192
    %v1053 = vsel %vm1052, %v1050, %v1042
    %v1054 = vsel %vm1052, %v1051, %v1044
    %v1055 = vld [vmem:[%s5] sm:$0x1]
    %v1057 = vperm.slane %v1055, 0
    %v1059 = vadd.f32 %v1053, %v1057
    %v1060 = vadd.f32 %v1054, %v1057
    %v1061 = vmax.f32 %v1059, 0.0
    %v1062 = vmax.f32 %v1060, 0.0
    %v1063 = vld [vmem:[%s6] sm:$0xff]
    %v1064 = vld [vmem:[%s6 + $0x8] sm:$0xff]
    %v1065 = vld [vmem:[%s6 + $0x10] sm:$0xff]
    %v1066 = vld [vmem:[%s6 + $0x18] sm:$0xff]
    %v1067 = vld [vmem:[%s6 + $0x20] sm:$0xff]
    %v1068 = vld [vmem:[%s6 + $0x28] sm:$0xff]
    %v1069 = vld [vmem:[%s6 + $0x30] sm:$0xff]
    %v1070 = vld [vmem:[%s6 + $0x38] sm:$0xff]
    %v1072 = vsel %vm89, %v1061, 0
    %v1075 = vsel %vm89, %v1062, 0
    %1077 = vmatpush.msra.mxu0 0.0
    %1078 = vmatpush.msra.mxu0 0.0
    %1079 = vmatpush.msra.mxu0 0.0
    %1080 = vmatpush.msra.mxu0 0.0
    %1081 = vmatpush.msra.mxu0 0.0
    %1082 = vmatpush.msra.mxu0 0.0
    %1083 = vmatpush.msra.mxu0 0.0
    %1084 = vmatpush.msra.mxu0 0.0
    %1085 = vmatpush.msra.mxu0 %v1070
    %1086 = vmatpush.msra.mxu0 %v1069
    %1087 = vmatpush.msra.mxu0 %v1068
    %1088 = vmatpush.msra.mxu0 %v1067
    %1089 = vmatpush.msra.mxu0 %v1066
    %1090 = vmatpush.msra.mxu0 %v1065
    %1091 = vmatpush.msra.mxu0 %v1064
    %1092 = vmatpush.msra.mxu0 %v1063
    %1093 = vmatmul.f32.gmra.mxu0 %v1072
    %v1094 = vpop.f32.mrf.mxu0
    %v1095 = vadd.f32 0.0, %v1094
    %1096 = vmatmul.f32.gmra.mxu0 %v1075
    %v1097 = vpop.f32.mrf.mxu0
    %v1098 = vadd.f32 0.0, %v1097
    %1099 = vdwg.mxu0
    %v1100 = vld [vmem:[%s7] sm:$0xff]
    %v1101 = vld [vmem:[%s7 + $0x8] sm:$0xff]
    %v1102 = vld [vmem:[%s7 + $0x10] sm:$0xff]
    %v1103 = vld [vmem:[%s7 + $0x18] sm:$0xff]
    %v1104 = vld [vmem:[%s7 + $0x20] sm:$0xff]
    %v1105 = vld [vmem:[%s7 + $0x28] sm:$0xff]
    %v1106 = vld [vmem:[%s7 + $0x30] sm:$0xff]
    %v1107 = vld [vmem:[%s7 + $0x38] sm:$0xff]
    %v1108 = vld [vmem:[%s7 + $0x40] sm:$0xff]
    %v1109 = vld [vmem:[%s7 + $0x48] sm:$0xff]
    %v1110 = vld [vmem:[%s7 + $0x50] sm:$0xff]
    %v1111 = vld [vmem:[%s7 + $0x58] sm:$0xff]
    %v1112 = vld [vmem:[%s7 + $0x60] sm:$0xff]
    %v1113 = vld [vmem:[%s7 + $0x68] sm:$0xff]
    %v1114 = vld [vmem:[%s7 + $0x70] sm:$0xff]
    %v1115 = vld [vmem:[%s7 + $0x78] sm:$0xff]
    %1116 = vmatpush.msra.mxu0 %v1115
    %1117 = vmatpush.msra.mxu0 %v1114
    %1118 = vmatpush.msra.mxu0 %v1113
    %1119 = vmatpush.msra.mxu0 %v1112
    %1120 = vmatpush.msra.mxu0 %v1111
    %1121 = vmatpush.msra.mxu0 %v1110
    %1122 = vmatpush.msra.mxu0 %v1109
    %1123 = vmatpush.msra.mxu0 %v1108
    %1124 = vmatpush.msra.mxu0 %v1107
    %1125 = vmatpush.msra.mxu0 %v1106
    %1126 = vmatpush.msra.mxu0 %v1105
    %1127 = vmatpush.msra.mxu0 %v1104
    %1128 = vmatpush.msra.mxu0 %v1103
    %1129 = vmatpush.msra.mxu0 %v1102
    %1130 = vmatpush.msra.mxu0 %v1101
    %1131 = vmatpush.msra.mxu0 %v1100
    %1132 = vmatmul.f32.gmra.mxu0 %v1095
    %v1133 = vpop.f32.mrf.mxu0
    %v1134 = vadd.f32 0.0, %v1133
    %1135 = vmatmul.f32.gmra.mxu0 %v1098
    %v1136 = vpop.f32.mrf.mxu0
    %v1137 = vadd.f32 0.0, %v1136
    %1138 = vdwg.mxu0
    %1139 = vxpose.xlu0.b32.start [1/16] %v1134, 128
    %1140 = vxpose.xlu0.b32.cont [2/16] %v1137, 128
    %1141 = vxpose.xlu0.b32.cont [3/16] 0.0, 128
    %1142 = vxpose.xlu0.b32.cont [4/16] 0.0, 128
    %1143 = vxpose.xlu0.b32.cont [5/16] 0.0, 128
    %1144 = vxpose.xlu0.b32.cont [6/16] 0.0, 128
    %1145 = vxpose.xlu0.b32.cont [7/16] 0.0, 128
    %1146 = vxpose.xlu0.b32.cont [8/16] 0.0, 128
    %1147 = vxpose.xlu0.b32.cont [9/16] 0.0, 128
    %1148 = vxpose.xlu0.b32.cont [10/16] 0.0, 128
    %1149 = vxpose.xlu0.b32.cont [11/16] 0.0, 128
    %1150 = vxpose.xlu0.b32.cont [12/16] 0.0, 128
    %1151 = vxpose.xlu0.b32.cont [13/16] 0.0, 128
    %1152 = vxpose.xlu0.b32.cont [14/16] 0.0, 128
    %1153 = vxpose.xlu0.b32.cont [15/16] 0.0, 128
    %1154 = vxpose.xlu0.b32.end [16/16] 0.0, 128
    %v1155 = vpop.trf.xlu0
    %v1156 = vpop.trf.xlu0
    %v1157 = vpop.trf.xlu0
    %v1158 = vpop.trf.xlu0
    %v1159 = vpop.trf.xlu0
    %v1160 = vpop.trf.xlu0
    %v1161 = vpop.trf.xlu0
    %v1162 = vpop.trf.xlu0
    %v1163 = vpop.trf.xlu0
    %v1164 = vpop.trf.xlu0
    %v1165 = vpop.trf.xlu0
    %v1166 = vpop.trf.xlu0
    %v1167 = vpop.trf.xlu0
    %v1168 = vpop.trf.xlu0
    %v1169 = vpop.trf.xlu0
    %v1170 = vpop.trf.xlu0
    %v1171 = vperm.slane %v1155, 4
    %v1172 = vlaneseq
    %v1173 = vshrl.u32 %v1172, 7
    %1175 = vset.pattern.permute.xlu0 %v1173
    %1176 = vperm.xlu0 %1175, %v1171
    %v1177 = vpop.permute.xlu0 %1176
    %v1178 = vlaneseq
    %v1179 = vshrl.u32 %v1178, 7
    %v1180 = vadd.s32 %v1179, 8
    %1181 = vset.pattern.permute.xlu0 %v1180
    %1182 = vperm.xlu0 %1181, %v1171
    %v1183 = vpop.permute.xlu0 %1182
    %v1184 = vperm.slane %v1155, 5
    %v1185 = vlaneseq
    %v1186 = vshrl.u32 %v1185, 7
    %1188 = vset.pattern.permute.xlu0 %v1186
    %1189 = vperm.xlu0 %1188, %v1184
    %v1190 = vpop.permute.xlu0 %1189
    %v1191 = vlaneseq
    %v1192 = vshrl.u32 %v1191, 7
    %v1193 = vadd.s32 %v1192, 8
    %1194 = vset.pattern.permute.xlu0 %v1193
    %1195 = vperm.xlu0 %1194, %v1184
    %v1196 = vpop.permute.xlu0 %1195
    %v1197 = vperm.slane %v1155, 6
    %v1198 = vlaneseq
    %v1199 = vshrl.u32 %v1198, 7
    %1201 = vset.pattern.permute.xlu0 %v1199
    %1202 = vperm.xlu0 %1201, %v1197
    %v1203 = vpop.permute.xlu0 %1202
    %v1204 = vlaneseq
    %v1205 = vshrl.u32 %v1204, 7
    %v1206 = vadd.s32 %v1205, 8
    %1207 = vset.pattern.permute.xlu0 %v1206
    %1208 = vperm.xlu0 %1207, %v1197
    %v1209 = vpop.permute.xlu0 %1208
    %v1210 = vperm.slane %v1155, 7
    %v1211 = vlaneseq
    %v1212 = vshrl.u32 %v1211, 7
    %1214 = vset.pattern.permute.xlu0 %v1212
    %1215 = vperm.xlu0 %1214, %v1210
    %v1216 = vpop.permute.xlu0 %1215
    %v1217 = vlaneseq
    %v1218 = vshrl.u32 %v1217, 7
    %v1219 = vadd.s32 %v1218, 8
    %1220 = vset.pattern.permute.xlu0 %v1219
    %1221 = vperm.xlu0 %1220, %v1210
    %v1222 = vpop.permute.xlu0 %1221
    %v1224 = vrot.slane %v1155, 1
    %v1225 = vrot.slane %v1155, 2
    %v1226 = vrot.slane %v1155, 3
    %v1227 = vperm.slane %v1155, 0
    %v1228 = vperm.slane %v1224, 0
    %v1229 = vperm.slane %v1225, 0
    %v1230 = vperm.slane %v1226, 0
    %v1235 = vadd.f32 %v1177, %v1227
    %v1236 = vadd.f32 %v1183, %v1227
    %v1237 = vadd.f32 %v1190, %v1228
    %v1238 = vadd.f32 %v1196, %v1228
    %v1239 = vadd.f32 %v1203, %v1229
    %v1240 = vadd.f32 %v1209, %v1229
    %v1241 = vadd.f32 %v1216, %v1230
    %v1242 = vadd.f32 %v1222, %v1230
    %vm1243 = vcmp.gt.f32.partialorder %v1235, 0.0
    %vm1244 = vcmp.gt.f32.partialorder %v1236, 0.0
    %vm1245 = vcmp.gt.f32.partialorder %v1237, 0.0
    %vm1246 = vcmp.gt.f32.partialorder %v1238, 0.0
    %vm1247 = vcmp.gt.f32.partialorder %v1239, 0.0
    %vm1248 = vcmp.gt.f32.partialorder %v1240, 0.0
    %vm1249 = vcmp.gt.f32.partialorder %v1241, 0.0
    %vm1250 = vcmp.gt.f32.partialorder %v1242, 0.0
    %v1251 = vmul.f32 %v1235, 0.2
    %v1252 = vmul.f32 %v1236, 0.2
    %v1253 = vmul.f32 %v1237, 0.2
    %v1254 = vmul.f32 %v1238, 0.2
    %v1255 = vmul.f32 %v1239, 0.2
    %v1256 = vmul.f32 %v1240, 0.2
    %v1257 = vmul.f32 %v1241, 0.2
    %v1258 = vmul.f32 %v1242, 0.2
    %v1259 = vsel %vm1243, %v1235, %v1251
    %v1260 = vsel %vm1244, %v1236, %v1252
    %v1261 = vsel %vm1245, %v1237, %v1253
    %v1262 = vsel %vm1246, %v1238, %v1254
    %v1263 = vsel %vm1247, %v1239, %v1255
    %v1264 = vsel %vm1248, %v1240, %v1256
    %v1265 = vsel %vm1249, %v1241, %v1257
    %v1266 = vsel %vm1250, %v1242, %v1258
    %v1267 = vadd.f32 %v1259, %v46
    %v1268 = vadd.f32 %v1260, %v47
    %v1269 = vadd.f32 %v1261, %v46
    %v1270 = vadd.f32 %v1262, %v47
    %v1271 = vadd.f32 %v1263, %v46
    %v1272 = vadd.f32 %v1264, %v47
    %v1273 = vadd.f32 %v1265, %v46
    %v1274 = vadd.f32 %v1266, %v47
    %v1275 = vsel %vm255, %v1267, -inf
    %1276 = vmax.xlane.f32.xlu0 %v1275
    %v1277 = vpop.xlane.xlu0 %1276
    %v1278 = vsel %vm255, %v1268, -inf
    %1279 = vmax.xlane.f32.xlu0 %v1278
    %v1280 = vpop.xlane.xlu0 %1279
    %v1281 = vsel %vm255, %v1269, -inf
    %1282 = vmax.xlane.f32.xlu0 %v1281
    %v1283 = vpop.xlane.xlu0 %1282
    %v1284 = vsel %vm255, %v1270, -inf
    %1285 = vmax.xlane.f32.xlu0 %v1284
    %v1286 = vpop.xlane.xlu0 %1285
    %v1287 = vsel %vm255, %v1271, -inf
    %1288 = vmax.xlane.f32.xlu0 %v1287
    %v1289 = vpop.xlane.xlu0 %1288
    %v1290 = vsel %vm255, %v1272, -inf
    %1291 = vmax.xlane.f32.xlu0 %v1290
    %v1292 = vpop.xlane.xlu0 %1291
    %v1293 = vsel %vm255, %v1273, -inf
    %1294 = vmax.xlane.f32.xlu0 %v1293
    %v1295 = vpop.xlane.xlu0 %1294
    %v1296 = vsel %vm255, %v1274, -inf
    %1297 = vmax.xlane.f32.xlu0 %v1296
    %v1298 = vpop.xlane.xlu0 %1297
    %v1299 = vsub.f32 %v1267, %v1277
    %v1300 = vsub.f32 %v1268, %v1280
    %v1301 = vsub.f32 %v1269, %v1283
    %v1302 = vsub.f32 %v1270, %v1286
    %v1303 = vsub.f32 %v1271, %v1289
    %v1304 = vsub.f32 %v1272, %v1292
    %v1305 = vsub.f32 %v1273, %v1295
    %v1306 = vsub.f32 %v1274, %v1298
    %v1307 = vmul.f32 %v1299, 1.442695
    %v1308 = vpow.pop %v1307
    %v1309 = vmul.f32 %v1300, 1.442695
    %v1310 = vpow.pop %v1309
    %v1311 = vmul.f32 %v1301, 1.442695
    %v1312 = vpow.pop %v1311
    %v1313 = vmul.f32 %v1302, 1.442695
    %v1314 = vpow.pop %v1313
    %v1315 = vmul.f32 %v1303, 1.442695
    %v1316 = vpow.pop %v1315
    %v1317 = vmul.f32 %v1304, 1.442695
    %v1318 = vpow.pop %v1317
    %v1319 = vmul.f32 %v1305, 1.442695
    %v1320 = vpow.pop %v1319
    %v1321 = vmul.f32 %v1306, 1.442695
    %v1322 = vpow.pop %v1321
    %v1323 = vsel %vm255, %v1308, 0.0
    %1324 = vadd.xlane.f32.xlu0 %v1323
    %v1325 = vpop.xlane.xlu0 %1324
    %v1326 = vsel %vm255, %v1310, 0.0
    %1327 = vadd.xlane.f32.xlu0 %v1326
    %v1328 = vpop.xlane.xlu0 %1327
    %v1329 = vsel %vm255, %v1312, 0.0
    %1330 = vadd.xlane.f32.xlu0 %v1329
    %v1331 = vpop.xlane.xlu0 %1330
    %v1332 = vsel %vm255, %v1314, 0.0
    %1333 = vadd.xlane.f32.xlu0 %v1332
    %v1334 = vpop.xlane.xlu0 %1333
    %v1335 = vsel %vm255, %v1316, 0.0
    %1336 = vadd.xlane.f32.xlu0 %v1335
    %v1337 = vpop.xlane.xlu0 %1336
    %v1338 = vsel %vm255, %v1318, 0.0
    %1339 = vadd.xlane.f32.xlu0 %v1338
    %v1340 = vpop.xlane.xlu0 %1339
    %v1341 = vsel %vm255, %v1320, 0.0
    %1342 = vadd.xlane.f32.xlu0 %v1341
    %v1343 = vpop.xlane.xlu0 %1342
    %v1344 = vsel %vm255, %v1322, 0.0
    %1345 = vadd.xlane.f32.xlu0 %v1344
    %v1346 = vpop.xlane.xlu0 %1345
    %v1347 = vrcp.pop %v1325
    %v1348 = vmul.f32 %v1325, %v1347
    %v1349 = vsub.f32 1.0, %v1348
    %v1350 = vmul.f32 %v1347, %v1349
    %v1351 = vadd.f32 %v1347, %v1350
    %vm1352 = vweird.f32 %v1325
    %vm1353 = vweird.f32 %v1347
    %vm1354 = vmor %vm1352, %vm1353
    %v1355 = vsel %vm1354, %v1347, %v1351
    %v1356 = vand.u32 2147483647, %v1325
    %vm1357 = vcmp.eq.f32.partialorder %v1356, 8.507059e+37
    %v1358 = vand.u32 %v1325, 2147483648
    %v1359 = vor.u32 1.1754944e-38, %v1358
    %v1360 = vsel %vm1357, %v1359, %v1355
    %v1361 = vmul.f32 %v1308, %v1360
    %v1362 = vrcp.pop %v1328
    %v1363 = vmul.f32 %v1328, %v1362
    %v1364 = vsub.f32 1.0, %v1363
    %v1365 = vmul.f32 %v1362, %v1364
    %v1366 = vadd.f32 %v1362, %v1365
    %vm1367 = vweird.f32 %v1328
    %vm1368 = vweird.f32 %v1362
    %vm1369 = vmor %vm1367, %vm1368
    %v1370 = vsel %vm1369, %v1362, %v1366
    %v1371 = vand.u32 2147483647, %v1328
    %vm1372 = vcmp.eq.f32.partialorder %v1371, 8.507059e+37
    %v1373 = vand.u32 %v1328, 2147483648
    %v1374 = vor.u32 1.1754944e-38, %v1373
    %v1375 = vsel %vm1372, %v1374, %v1370
    %v1376 = vmul.f32 %v1310, %v1375
    %v1377 = vrcp.pop %v1331
    %v1378 = vmul.f32 %v1331, %v1377
    %v1379 = vsub.f32 1.0, %v1378
    %v1380 = vmul.f32 %v1377, %v1379
    %v1381 = vadd.f32 %v1377, %v1380
    %vm1382 = vweird.f32 %v1331
    %vm1383 = vweird.f32 %v1377
    %vm1384 = vmor %vm1382, %vm1383
    %v1385 = vsel %vm1384, %v1377, %v1381
    %v1386 = vand.u32 2147483647, %v1331
    %vm1387 = vcmp.eq.f32.partialorder %v1386, 8.507059e+37
    %v1388 = vand.u32 %v1331, 2147483648
    %v1389 = vor.u32 1.1754944e-38, %v1388
    %v1390 = vsel %vm1387, %v1389, %v1385
    %v1391 = vmul.f32 %v1312, %v1390
    %v1392 = vrcp.pop %v1334
    %v1393 = vmul.f32 %v1334, %v1392
    %v1394 = vsub.f32 1.0, %v1393
    %v1395 = vmul.f32 %v1392, %v1394
    %v1396 = vadd.f32 %v1392, %v1395
    %vm1397 = vweird.f32 %v1334
    %vm1398 = vweird.f32 %v1392
    %vm1399 = vmor %vm1397, %vm1398
    %v1400 = vsel %vm1399, %v1392, %v1396
    %v1401 = vand.u32 2147483647, %v1334
    %vm1402 = vcmp.eq.f32.partialorder %v1401, 8.507059e+37
    %v1403 = vand.u32 %v1334, 2147483648
    %v1404 = vor.u32 1.1754944e-38, %v1403
    %v1405 = vsel %vm1402, %v1404, %v1400
    %v1406 = vmul.f32 %v1314, %v1405
    %v1407 = vrcp.pop %v1337
    %v1408 = vmul.f32 %v1337, %v1407
    %v1409 = vsub.f32 1.0, %v1408
    %v1410 = vmul.f32 %v1407, %v1409
    %v1411 = vadd.f32 %v1407, %v1410
    %vm1412 = vweird.f32 %v1337
    %vm1413 = vweird.f32 %v1407
    %vm1414 = vmor %vm1412, %vm1413
    %v1415 = vsel %vm1414, %v1407, %v1411
    %v1416 = vand.u32 2147483647, %v1337
    %vm1417 = vcmp.eq.f32.partialorder %v1416, 8.507059e+37
    %v1418 = vand.u32 %v1337, 2147483648
    %v1419 = vor.u32 1.1754944e-38, %v1418
    %v1420 = vsel %vm1417, %v1419, %v1415
    %v1421 = vmul.f32 %v1316, %v1420
    %v1422 = vrcp.pop %v1340
    %v1423 = vmul.f32 %v1340, %v1422
    %v1424 = vsub.f32 1.0, %v1423
    %v1425 = vmul.f32 %v1422, %v1424
    %v1426 = vadd.f32 %v1422, %v1425
    %vm1427 = vweird.f32 %v1340
    %vm1428 = vweird.f32 %v1422
    %vm1429 = vmor %vm1427, %vm1428
    %v1430 = vsel %vm1429, %v1422, %v1426
    %v1431 = vand.u32 2147483647, %v1340
    %vm1432 = vcmp.eq.f32.partialorder %v1431, 8.507059e+37
    %v1433 = vand.u32 %v1340, 2147483648
    %v1434 = vor.u32 1.1754944e-38, %v1433
    %v1435 = vsel %vm1432, %v1434, %v1430
    %v1436 = vmul.f32 %v1318, %v1435
    %v1437 = vrcp.pop %v1343
    %v1438 = vmul.f32 %v1343, %v1437
    %v1439 = vsub.f32 1.0, %v1438
    %v1440 = vmul.f32 %v1437, %v1439
    %v1441 = vadd.f32 %v1437, %v1440
    %vm1442 = vweird.f32 %v1343
    %vm1443 = vweird.f32 %v1437
    %vm1444 = vmor %vm1442, %vm1443
    %v1445 = vsel %vm1444, %v1437, %v1441
    %v1446 = vand.u32 2147483647, %v1343
    %vm1447 = vcmp.eq.f32.partialorder %v1446, 8.507059e+37
    %v1448 = vand.u32 %v1343, 2147483648
    %v1449 = vor.u32 1.1754944e-38, %v1448
    %v1450 = vsel %vm1447, %v1449, %v1445
    %v1451 = vmul.f32 %v1320, %v1450
    %v1452 = vrcp.pop %v1346
    %v1453 = vmul.f32 %v1346, %v1452
    %v1454 = vsub.f32 1.0, %v1453
    %v1455 = vmul.f32 %v1452, %v1454
    %v1456 = vadd.f32 %v1452, %v1455
    %vm1457 = vweird.f32 %v1346
    %vm1458 = vweird.f32 %v1452
    %vm1459 = vmor %vm1457, %vm1458
    %v1460 = vsel %vm1459, %v1452, %v1456
    %v1461 = vand.u32 2147483647, %v1346
    %vm1462 = vcmp.eq.f32.partialorder %v1461, 8.507059e+37
    %v1463 = vand.u32 %v1346, 2147483648
    %v1464 = vor.u32 1.1754944e-38, %v1463
    %v1465 = vsel %vm1462, %v1464, %v1460
    %v1466 = vmul.f32 %v1322, %v1465
    %1469 = vrot.lane.b32.xlu0 %v1095, 96
    %v1470 = vpop.permute.xlu0 %1469
    %1471 = vrot.lane.b32.xlu0 %v1098, 96
    %v1472 = vpop.permute.xlu0 %1471
    %1475 = vrot.lane.b32.xlu0 %v1095, 64
    %v1476 = vpop.permute.xlu0 %1475
    %1477 = vrot.lane.b32.xlu0 %v1098, 64
    %v1478 = vpop.permute.xlu0 %1477
    %1481 = vrot.lane.b32.xlu0 %v1095, 32
    %v1482 = vpop.permute.xlu0 %1481
    %1483 = vrot.lane.b32.xlu0 %v1098, 32
    %v1484 = vpop.permute.xlu0 %1483
    %v1487 = vrot.slane %v1476, 4
    %v1488 = vsel %vm467, %v1487, %v1095
    %v1489 = vrot.slane %v1095, 4
    %v1490 = vsel %vm467, %v1476, %v1489
    %v1492 = vunpack.c.l.s4 1983009808
    %v1493 = vunpack.c.0.s8 %v1492
    %v1494 = vperm.slane %v1488, %v1493
    %v1496 = vunpack.c.l.s4 1983009808
    %v1497 = vunpack.c.0.s8 %v1496
    %v1498 = vperm.slane %v1490, %v1497
    %v1499 = vrot.slane %v1482, 4
    %v1500 = vsel %vm467, %v1499, %v1470
    %v1501 = vrot.slane %v1470, 4
    %v1502 = vsel %vm467, %v1482, %v1501
    %v1504 = vunpack.c.l.s4 1983009808
    %v1505 = vunpack.c.0.s8 %v1504
    %v1506 = vperm.slane %v1500, %v1505
    %v1508 = vunpack.c.l.s4 1983009808
    %v1509 = vunpack.c.0.s8 %v1508
    %v1510 = vperm.slane %v1502, %v1509
    %v1511 = vrot.slane %v1506, 4
    %v1512 = vsel %vm467, %v1511, %v1494
    %v1513 = vrot.slane %v1494, 4
    %v1514 = vsel %vm467, %v1506, %v1513
    %v1516 = vunpack.c.l.s4 1934713408
    %v1517 = vunpack.c.0.s8 %v1516
    %v1518 = vperm.slane %v1512, %v1517
    %v1520 = vunpack.c.l.s4 1934713408
    %v1521 = vunpack.c.0.s8 %v1520
    %v1522 = vperm.slane %v1514, %v1521
    %v1523 = vrot.slane %v1510, 4
    %v1524 = vsel %vm467, %v1523, %v1498
    %v1525 = vrot.slane %v1498, 4
    %v1526 = vsel %vm467, %v1510, %v1525
    %v1528 = vunpack.c.l.s4 1934713408
    %v1529 = vunpack.c.0.s8 %v1528
    %v1530 = vperm.slane %v1524, %v1529
    %v1532 = vunpack.c.l.s4 1934713408
    %v1533 = vunpack.c.0.s8 %v1532
    %v1534 = vperm.slane %v1526, %v1533
    %v1535 = vrot.slane %v1518, 4
    %v1536 = vsel %vm467, 0.0, %v1535
    %v1537 = vrot.slane %v1522, 4
    %v1538 = vsel %vm467, 0.0, %v1537
    %v1539 = vrot.slane %v1530, 4
    %v1540 = vsel %vm467, 0.0, %v1539
    %v1541 = vrot.slane %v1534, 4
    %v1542 = vsel %vm467, 0.0, %v1541
    %v1543 = vrot.slane %v1478, 4
    %v1544 = vsel %vm467, %v1543, %v1098
    %v1545 = vrot.slane %v1098, 4
    %v1546 = vsel %vm467, %v1478, %v1545
    %v1548 = vunpack.c.l.s4 1983009808
    %v1549 = vunpack.c.0.s8 %v1548
    %v1550 = vperm.slane %v1544, %v1549
    %v1552 = vunpack.c.l.s4 1983009808
    %v1553 = vunpack.c.0.s8 %v1552
    %v1554 = vperm.slane %v1546, %v1553
    %v1555 = vrot.slane %v1484, 4
    %v1556 = vsel %vm467, %v1555, %v1472
    %v1557 = vrot.slane %v1472, 4
    %v1558 = vsel %vm467, %v1484, %v1557
    %v1560 = vunpack.c.l.s4 1983009808
    %v1561 = vunpack.c.0.s8 %v1560
    %v1562 = vperm.slane %v1556, %v1561
    %v1564 = vunpack.c.l.s4 1983009808
    %v1565 = vunpack.c.0.s8 %v1564
    %v1566 = vperm.slane %v1558, %v1565
    %v1567 = vrot.slane %v1562, 4
    %v1568 = vsel %vm467, %v1567, %v1550
    %v1569 = vrot.slane %v1550, 4
    %v1570 = vsel %vm467, %v1562, %v1569
    %v1572 = vunpack.c.l.s4 1934713408
    %v1573 = vunpack.c.0.s8 %v1572
    %v1574 = vperm.slane %v1568, %v1573
    %v1576 = vunpack.c.l.s4 1934713408
    %v1577 = vunpack.c.0.s8 %v1576
    %v1578 = vperm.slane %v1570, %v1577
    %v1579 = vrot.slane %v1566, 4
    %v1580 = vsel %vm467, %v1579, %v1554
    %v1581 = vrot.slane %v1554, 4
    %v1582 = vsel %vm467, %v1566, %v1581
    %v1584 = vunpack.c.l.s4 1934713408
    %v1585 = vunpack.c.0.s8 %v1584
    %v1586 = vperm.slane %v1580, %v1585
    %v1588 = vunpack.c.l.s4 1934713408
    %v1589 = vunpack.c.0.s8 %v1588
    %v1590 = vperm.slane %v1582, %v1589
    %v1591 = vrot.slane %v1574, 4
    %v1592 = vsel %vm467, 0.0, %v1591
    %v1593 = vrot.slane %v1578, 4
    %v1594 = vsel %vm467, 0.0, %v1593
    %v1595 = vrot.slane %v1586, 4
    %v1596 = vsel %vm467, 0.0, %v1595
    %v1597 = vrot.slane %v1590, 4
    %v1598 = vsel %vm467, 0.0, %v1597
    %v1599 = vsel %vm467, %v1537, %v1518
    %v1601 = vunpack.c.l.s4 1983009808
    %v1602 = vunpack.c.0.s8 %v1601
    %v1603 = vperm.slane %v1599, %v1602
    %v1604 = vrot.slane %v1538, 4
    %v1605 = vsel %vm467, %v1604, %v1536
    %v1607 = vunpack.c.l.s4 1983009808
    %v1608 = vunpack.c.0.s8 %v1607
    %v1609 = vperm.slane %v1605, %v1608
    %v1610 = vsel %vm467, %v1541, %v1530
    %v1612 = vunpack.c.l.s4 1983009808
    %v1613 = vunpack.c.0.s8 %v1612
    %v1614 = vperm.slane %v1610, %v1613
    %v1615 = vrot.slane %v1542, 4
    %v1616 = vsel %vm467, %v1615, %v1540
    %v1618 = vunpack.c.l.s4 1983009808
    %v1619 = vunpack.c.0.s8 %v1618
    %v1620 = vperm.slane %v1616, %v1619
    %v1621 = vrot.slane %v1609, 4
    %v1622 = vsel %vm467, %v1621, %v1603
    %v1623 = vrot.slane %v1603, 4
    %v1624 = vsel %vm467, %v1609, %v1623
    %v1626 = vunpack.c.l.s4 1934713408
    %v1627 = vunpack.c.0.s8 %v1626
    %v1628 = vperm.slane %v1622, %v1627
    %v1630 = vunpack.c.l.s4 1934713408
    %v1631 = vunpack.c.0.s8 %v1630
    %v1632 = vperm.slane %v1624, %v1631
    %v1633 = vrot.slane %v1620, 4
    %v1634 = vsel %vm467, %v1633, %v1614
    %v1635 = vrot.slane %v1614, 4
    %v1636 = vsel %vm467, %v1620, %v1635
    %v1638 = vunpack.c.l.s4 1934713408
    %v1639 = vunpack.c.0.s8 %v1638
    %v1640 = vperm.slane %v1634, %v1639
    %v1642 = vunpack.c.l.s4 1934713408
    %v1643 = vunpack.c.0.s8 %v1642
    %v1644 = vperm.slane %v1636, %v1643
    %v1645 = vrot.slane %v1640, 4
    %v1646 = vsel %vm467, %v1645, %v1628
    %v1647 = vrot.slane %v1628, 4
    %v1648 = vsel %vm467, %v1640, %v1647
    %v1649 = vrot.slane %v1644, 4
    %v1650 = vsel %vm467, %v1649, %v1632
    %v1651 = vrot.slane %v1632, 4
    %v1652 = vsel %vm467, %v1644, %v1651
    %v1653 = vsel %vm467, %v1593, %v1574
    %v1655 = vunpack.c.l.s4 1983009808
    %v1656 = vunpack.c.0.s8 %v1655
    %v1657 = vperm.slane %v1653, %v1656
    %v1658 = vrot.slane %v1594, 4
    %v1659 = vsel %vm467, %v1658, %v1592
    %v1661 = vunpack.c.l.s4 1983009808
    %v1662 = vunpack.c.0.s8 %v1661
    %v1663 = vperm.slane %v1659, %v1662
    %v1664 = vsel %vm467, %v1597, %v1586
    %v1666 = vunpack.c.l.s4 1983009808
    %v1667 = vunpack.c.0.s8 %v1666
    %v1668 = vperm.slane %v1664, %v1667
    %v1669 = vrot.slane %v1598, 4
    %v1670 = vsel %vm467, %v1669, %v1596
    %v1672 = vunpack.c.l.s4 1983009808
    %v1673 = vunpack.c.0.s8 %v1672
    %v1674 = vperm.slane %v1670, %v1673
    %v1675 = vrot.slane %v1663, 4
    %v1676 = vsel %vm467, %v1675, %v1657
    %v1677 = vrot.slane %v1657, 4
    %v1678 = vsel %vm467, %v1663, %v1677
    %v1680 = vunpack.c.l.s4 1934713408
    %v1681 = vunpack.c.0.s8 %v1680
    %v1682 = vperm.slane %v1676, %v1681
    %v1684 = vunpack.c.l.s4 1934713408
    %v1685 = vunpack.c.0.s8 %v1684
    %v1686 = vperm.slane %v1678, %v1685
    %v1687 = vrot.slane %v1674, 4
    %v1688 = vsel %vm467, %v1687, %v1668
    %v1689 = vrot.slane %v1668, 4
    %v1690 = vsel %vm467, %v1674, %v1689
    %v1692 = vunpack.c.l.s4 1934713408
    %v1693 = vunpack.c.0.s8 %v1692
    %v1694 = vperm.slane %v1688, %v1693
    %v1696 = vunpack.c.l.s4 1934713408
    %v1697 = vunpack.c.0.s8 %v1696
    %v1698 = vperm.slane %v1690, %v1697
    %v1699 = vrot.slane %v1694, 4
    %v1700 = vsel %vm467, %v1699, %v1682
    %v1701 = vrot.slane %v1682, 4
    %v1702 = vsel %vm467, %v1694, %v1701
    %v1703 = vrot.slane %v1698, 4
    %v1704 = vsel %vm467, %v1703, %v1686
    %v1705 = vrot.slane %v1686, 4
    %v1706 = vsel %vm467, %v1698, %v1705
    %v1708 = vsel %vm255, %v1361, 0
    %v1711 = vsel %vm255, %v1376, 0
    %1713 = vmatpush.msra.mxu0 0.0
    %1714 = vmatpush.msra.mxu0 0.0
    %1715 = vmatpush.msra.mxu0 0.0
    %1716 = vmatpush.msra.mxu0 0.0
    %1717 = vmatpush.msra.mxu0 0.0
    %1718 = vmatpush.msra.mxu0 0.0
    %1719 = vmatpush.msra.mxu0 0.0
    %1720 = vmatpush.msra.mxu0 0.0
    %1721 = vmatpush.msra.mxu0 0.0
    %1722 = vmatpush.msra.mxu0 0.0
    %1723 = vmatpush.msra.mxu0 0.0
    %1724 = vmatpush.msra.mxu0 0.0
    %1725 = vmatpush.msra.mxu0 0.0
    %1726 = vmatpush.msra.mxu0 0.0
    %1727 = vmatpush.msra.mxu0 %v1700
    %1728 = vmatpush.msra.mxu0 %v1646
    %1729 = vmatmul.f32.gmra.mxu0 %v1708
    %v1730 = vpop.f32.mrf.mxu0
    %v1731 = vadd.f32 0.0, %v1730
    %1732 = vmatmul.f32.gmra.mxu0 %v1711
    %v1733 = vpop.f32.mrf.mxu0
    %v1734 = vadd.f32 0.0, %v1733
    %1735 = vdwg.mxu0
    %v1737 = vsel %vm255, %v1391, 0
    %v1740 = vsel %vm255, %v1406, 0
    %1742 = vmatpush.msra.mxu0 0.0
    %1743 = vmatpush.msra.mxu0 0.0
    %1744 = vmatpush.msra.mxu0 0.0
    %1745 = vmatpush.msra.mxu0 0.0
    %1746 = vmatpush.msra.mxu0 0.0
    %1747 = vmatpush.msra.mxu0 0.0
    %1748 = vmatpush.msra.mxu0 0.0
    %1749 = vmatpush.msra.mxu0 0.0
    %1750 = vmatpush.msra.mxu0 0.0
    %1751 = vmatpush.msra.mxu0 0.0
    %1752 = vmatpush.msra.mxu0 0.0
    %1753 = vmatpush.msra.mxu0 0.0
    %1754 = vmatpush.msra.mxu0 0.0
    %1755 = vmatpush.msra.mxu0 0.0
    %1756 = vmatpush.msra.mxu0 %v1702
    %1757 = vmatpush.msra.mxu0 %v1648
    %1758 = vmatmul.f32.gmra.mxu0 %v1737
    %v1759 = vpop.f32.mrf.mxu0
    %v1760 = vadd.f32 0.0, %v1759
    %1761 = vmatmul.f32.gmra.mxu0 %v1740
    %v1762 = vpop.f32.mrf.mxu0
    %v1763 = vadd.f32 0.0, %v1762
    %1764 = vdwg.mxu0
    %v1766 = vsel %vm255, %v1421, 0
    %v1769 = vsel %vm255, %v1436, 0
    %1771 = vmatpush.msra.mxu0 0.0
    %1772 = vmatpush.msra.mxu0 0.0
    %1773 = vmatpush.msra.mxu0 0.0
    %1774 = vmatpush.msra.mxu0 0.0
    %1775 = vmatpush.msra.mxu0 0.0
    %1776 = vmatpush.msra.mxu0 0.0
    %1777 = vmatpush.msra.mxu0 0.0
    %1778 = vmatpush.msra.mxu0 0.0
    %1779 = vmatpush.msra.mxu0 0.0
    %1780 = vmatpush.msra.mxu0 0.0
    %1781 = vmatpush.msra.mxu0 0.0
    %1782 = vmatpush.msra.mxu0 0.0
    %1783 = vmatpush.msra.mxu0 0.0
    %1784 = vmatpush.msra.mxu0 0.0
    %1785 = vmatpush.msra.mxu0 %v1704
    %1786 = vmatpush.msra.mxu0 %v1650
    %1787 = vmatmul.f32.gmra.mxu0 %v1766
    %v1788 = vpop.f32.mrf.mxu0
    %v1789 = vadd.f32 0.0, %v1788
    %1790 = vmatmul.f32.gmra.mxu0 %v1769
    %v1791 = vpop.f32.mrf.mxu0
    %v1792 = vadd.f32 0.0, %v1791
    %1793 = vdwg.mxu0
    %v1795 = vsel %vm255, %v1451, 0
    %v1798 = vsel %vm255, %v1466, 0
    %1800 = vmatpush.msra.mxu0 0.0
    %1801 = vmatpush.msra.mxu0 0.0
    %1802 = vmatpush.msra.mxu0 0.0
    %1803 = vmatpush.msra.mxu0 0.0
    %1804 = vmatpush.msra.mxu0 0.0
    %1805 = vmatpush.msra.mxu0 0.0
    %1806 = vmatpush.msra.mxu0 0.0
    %1807 = vmatpush.msra.mxu0 0.0
    %1808 = vmatpush.msra.mxu0 0.0
    %1809 = vmatpush.msra.mxu0 0.0
    %1810 = vmatpush.msra.mxu0 0.0
    %1811 = vmatpush.msra.mxu0 0.0
    %1812 = vmatpush.msra.mxu0 0.0
    %1813 = vmatpush.msra.mxu0 0.0
    %1814 = vmatpush.msra.mxu0 %v1706
    %1815 = vmatpush.msra.mxu0 %v1652
    %1816 = vmatmul.f32.gmra.mxu0 %v1795
    %v1817 = vpop.f32.mrf.mxu0
    %v1818 = vadd.f32 0.0, %v1817
    %1819 = vmatmul.f32.gmra.mxu0 %v1798
    %v1820 = vpop.f32.mrf.mxu0
    %v1821 = vadd.f32 0.0, %v1820
    %1822 = vdwg.mxu0
    %v1823 = vrot.slane %v1789, 4
    %v1824 = vsel %vm467, %v1823, %v1731
    %v1825 = vrot.slane %v1731, 4
    %v1826 = vsel %vm467, %v1789, %v1825
    %v1828 = vunpack.c.l.s4 1983009808
    %v1829 = vunpack.c.0.s8 %v1828
    %v1830 = vperm.slane %v1824, %v1829
    %v1832 = vunpack.c.l.s4 1983009808
    %v1833 = vunpack.c.0.s8 %v1832
    %v1834 = vperm.slane %v1826, %v1833
    %v1835 = vrot.slane %v1818, 4
    %v1836 = vsel %vm467, %v1835, %v1760
    %v1837 = vrot.slane %v1760, 4
    %v1838 = vsel %vm467, %v1818, %v1837
    %v1840 = vunpack.c.l.s4 1983009808
    %v1841 = vunpack.c.0.s8 %v1840
    %v1842 = vperm.slane %v1836, %v1841
    %v1844 = vunpack.c.l.s4 1983009808
    %v1845 = vunpack.c.0.s8 %v1844
    %v1846 = vperm.slane %v1838, %v1845
    %v1847 = vrot.slane %v1842, 4
    %v1848 = vsel %vm467, %v1847, %v1830
    %v1849 = vrot.slane %v1830, 4
    %v1850 = vsel %vm467, %v1842, %v1849
    %v1852 = vunpack.c.l.s4 1934713408
    %v1853 = vunpack.c.0.s8 %v1852
    %v1854 = vperm.slane %v1848, %v1853
    %v1856 = vunpack.c.l.s4 1934713408
    %v1857 = vunpack.c.0.s8 %v1856
    %v1858 = vperm.slane %v1850, %v1857
    %v1859 = vrot.slane %v1846, 4
    %v1860 = vsel %vm467, %v1859, %v1834
    %v1861 = vrot.slane %v1834, 4
    %v1862 = vsel %vm467, %v1846, %v1861
    %v1864 = vunpack.c.l.s4 1934713408
    %v1865 = vunpack.c.0.s8 %v1864
    %v1866 = vperm.slane %v1860, %v1865
    %v1868 = vunpack.c.l.s4 1934713408
    %v1869 = vunpack.c.0.s8 %v1868
    %v1870 = vperm.slane %v1862, %v1869
    %v1871 = vrot.slane %v1854, 4
    %v1872 = vsel %vm467, 0.0, %v1871
    %v1873 = vrot.slane %v1858, 4
    %v1874 = vsel %vm467, 0.0, %v1873
    %v1875 = vrot.slane %v1866, 4
    %v1876 = vsel %vm467, 0.0, %v1875
    %v1877 = vrot.slane %v1870, 4
    %v1878 = vsel %vm467, 0.0, %v1877
    %v1879 = vrot.slane %v1792, 4
    %v1880 = vsel %vm467, %v1879, %v1734
    %v1881 = vrot.slane %v1734, 4
    %v1882 = vsel %vm467, %v1792, %v1881
    %v1884 = vunpack.c.l.s4 1983009808
    %v1885 = vunpack.c.0.s8 %v1884
    %v1886 = vperm.slane %v1880, %v1885
    %v1888 = vunpack.c.l.s4 1983009808
    %v1889 = vunpack.c.0.s8 %v1888
    %v1890 = vperm.slane %v1882, %v1889
    %v1891 = vrot.slane %v1821, 4
    %v1892 = vsel %vm467, %v1891, %v1763
    %v1893 = vrot.slane %v1763, 4
    %v1894 = vsel %vm467, %v1821, %v1893
    %v1896 = vunpack.c.l.s4 1983009808
    %v1897 = vunpack.c.0.s8 %v1896
    %v1898 = vperm.slane %v1892, %v1897
    %v1900 = vunpack.c.l.s4 1983009808
    %v1901 = vunpack.c.0.s8 %v1900
    %v1902 = vperm.slane %v1894, %v1901
    %v1903 = vrot.slane %v1898, 4
    %v1904 = vsel %vm467, %v1903, %v1886
    %v1905 = vrot.slane %v1886, 4
    %v1906 = vsel %vm467, %v1898, %v1905
    %v1908 = vunpack.c.l.s4 1934713408
    %v1909 = vunpack.c.0.s8 %v1908
    %v1910 = vperm.slane %v1904, %v1909
    %v1912 = vunpack.c.l.s4 1934713408
    %v1913 = vunpack.c.0.s8 %v1912
    %v1914 = vperm.slane %v1906, %v1913
    %v1915 = vrot.slane %v1902, 4
    %v1916 = vsel %vm467, %v1915, %v1890
    %v1917 = vrot.slane %v1890, 4
    %v1918 = vsel %vm467, %v1902, %v1917
    %v1920 = vunpack.c.l.s4 1934713408
    %v1921 = vunpack.c.0.s8 %v1920
    %v1922 = vperm.slane %v1916, %v1921
    %v1924 = vunpack.c.l.s4 1934713408
    %v1925 = vunpack.c.0.s8 %v1924
    %v1926 = vperm.slane %v1918, %v1925
    %v1927 = vrot.slane %v1910, 4
    %v1928 = vsel %vm467, 0.0, %v1927
    %v1929 = vrot.slane %v1914, 4
    %v1930 = vsel %vm467, 0.0, %v1929
    %v1931 = vrot.slane %v1922, 4
    %v1932 = vsel %vm467, 0.0, %v1931
    %v1933 = vrot.slane %v1926, 4
    %v1934 = vsel %vm467, 0.0, %v1933
    %v1935 = vsel %vm467, %v1873, %v1854
    %v1937 = vunpack.c.l.s4 1983009808
    %v1938 = vunpack.c.0.s8 %v1937
    %v1939 = vperm.slane %v1935, %v1938
    %v1940 = vrot.slane %v1874, 4
    %v1941 = vsel %vm467, %v1940, %v1872
    %v1943 = vunpack.c.l.s4 1983009808
    %v1944 = vunpack.c.0.s8 %v1943
    %v1945 = vperm.slane %v1941, %v1944
    %v1946 = vsel %vm467, %v1877, %v1866
    %v1948 = vunpack.c.l.s4 1983009808
    %v1949 = vunpack.c.0.s8 %v1948
    %v1950 = vperm.slane %v1946, %v1949
    %v1951 = vrot.slane %v1878, 4
    %v1952 = vsel %vm467, %v1951, %v1876
    %v1954 = vunpack.c.l.s4 1983009808
    %v1955 = vunpack.c.0.s8 %v1954
    %v1956 = vperm.slane %v1952, %v1955
    %v1957 = vrot.slane %v1945, 4
    %v1958 = vsel %vm467, %v1957, %v1939
    %v1959 = vrot.slane %v1939, 4
    %v1960 = vsel %vm467, %v1945, %v1959
    %v1962 = vunpack.c.l.s4 1934713408
    %v1963 = vunpack.c.0.s8 %v1962
    %v1964 = vperm.slane %v1958, %v1963
    %v1966 = vunpack.c.l.s4 1934713408
    %v1967 = vunpack.c.0.s8 %v1966
    %v1968 = vperm.slane %v1960, %v1967
    %v1969 = vrot.slane %v1956, 4
    %v1970 = vsel %vm467, %v1969, %v1950
    %v1971 = vrot.slane %v1950, 4
    %v1972 = vsel %vm467, %v1956, %v1971
    %v1974 = vunpack.c.l.s4 1934713408
    %v1975 = vunpack.c.0.s8 %v1974
    %v1976 = vperm.slane %v1970, %v1975
    %v1978 = vunpack.c.l.s4 1934713408
    %v1979 = vunpack.c.0.s8 %v1978
    %v1980 = vperm.slane %v1972, %v1979
    %v1981 = vrot.slane %v1976, 4
    %v1982 = vsel %vm467, %v1981, %v1964
    %v1983 = vrot.slane %v1964, 4
    %v1984 = vsel %vm467, %v1976, %v1983
    %v1985 = vrot.slane %v1980, 4
    %v1986 = vsel %vm467, %v1985, %v1968
    %v1987 = vrot.slane %v1968, 4
    %v1988 = vsel %vm467, %v1980, %v1987
    %v1989 = vsel %vm467, %v1929, %v1910
    %v1991 = vunpack.c.l.s4 1983009808
    %v1992 = vunpack.c.0.s8 %v1991
    %v1993 = vperm.slane %v1989, %v1992
    %v1994 = vrot.slane %v1930, 4
    %v1995 = vsel %vm467, %v1994, %v1928
    %v1997 = vunpack.c.l.s4 1983009808
    %v1998 = vunpack.c.0.s8 %v1997
    %v1999 = vperm.slane %v1995, %v1998
    %v2000 = vsel %vm467, %v1933, %v1922
    %v2002 = vunpack.c.l.s4 1983009808
    %v2003 = vunpack.c.0.s8 %v2002
    %v2004 = vperm.slane %v2000, %v2003
    %v2005 = vrot.slane %v1934, 4
    %v2006 = vsel %vm467, %v2005, %v1932
    %v2008 = vunpack.c.l.s4 1983009808
    %v2009 = vunpack.c.0.s8 %v2008
    %v2010 = vperm.slane %v2006, %v2009
    %v2011 = vrot.slane %v1999, 4
    %v2012 = vsel %vm467, %v2011, %v1993
    %v2013 = vrot.slane %v1993, 4
    %v2014 = vsel %vm467, %v1999, %v2013
    %v2016 = vunpack.c.l.s4 1934713408
    %v2017 = vunpack.c.0.s8 %v2016
    %v2018 = vperm.slane %v2012, %v2017
    %v2020 = vunpack.c.l.s4 1934713408
    %v2021 = vunpack.c.0.s8 %v2020
    %v2022 = vperm.slane %v2014, %v2021
    %v2023 = vrot.slane %v2010, 4
    %v2024 = vsel %vm467, %v2023, %v2004
    %v2025 = vrot.slane %v2004, 4
    %v2026 = vsel %vm467, %v2010, %v2025
    %v2028 = vunpack.c.l.s4 1934713408
    %v2029 = vunpack.c.0.s8 %v2028
    %v2030 = vperm.slane %v2024, %v2029
    %v2032 = vunpack.c.l.s4 1934713408
    %v2033 = vunpack.c.0.s8 %v2032
    %v2034 = vperm.slane %v2026, %v2033
    %v2035 = vrot.slane %v2030, 4
    %v2036 = vsel %vm467, %v2035, %v2018
    %v2037 = vrot.slane %v2018, 4
    %v2038 = vsel %vm467, %v2030, %v2037
    %v2039 = vrot.slane %v2034, 4
    %v2040 = vsel %vm467, %v2039, %v2022
    %v2041 = vrot.slane %v2022, 4
    %v2042 = vsel %vm467, %v2034, %v2041
    %2045 = vrot.lane.b32.xlu0 %v1984, 32
    %v2046 = vpop.permute.xlu0 %2045
    %2047 = vrot.lane.b32.xlu0 %v2038, 32
    %v2048 = vpop.permute.xlu0 %2047
    %2053 = vrot.lane.b32.xlu0 %v1986, 64
    %v2054 = vpop.permute.xlu0 %2053
    %2055 = vrot.lane.b32.xlu0 %v2040, 64
    %v2056 = vpop.permute.xlu0 %2055
    %2061 = vrot.lane.b32.xlu0 %v1988, 96
    %v2062 = vpop.permute.xlu0 %2061
    %2063 = vrot.lane.b32.xlu0 %v2042, 96
    %v2064 = vpop.permute.xlu0 %2063
    %v2067 = vsel %vm1049, %v1982, %v2046
    %v2068 = vsel %vm1049, %v2036, %v2048
    %v2069 = vsel %vm89, %v2067, %v2054
    %v2070 = vsel %vm89, %v2068, %v2056
    %vm2071 = vcmask 785408
    %v2072 = vsel %vm2071, %v2069, %v2062
    %v2073 = vsel %vm2071, %v2070, %v2064
    %v2074 = vld [vmem:[%s8] sm:$0x1]
    %v2076 = vperm.slane %v2074, 0
    %v2078 = vadd.f32 %v2072, %v2076
    %v2079 = vadd.f32 %v2073, %v2076
    %v2080 = vmax.f32 %v2078, 0.0
    %v2081 = vmax.f32 %v2079, 0.0
    %v2082 = vld [vmem:[%s9] sm:$0xff]
    %v2083 = vld [vmem:[%s9 + $0x8] sm:$0xff]
    %v2084 = vld [vmem:[%s9 + $0x10] sm:$0xff]
    %v2085 = vld [vmem:[%s9 + $0x18] sm:$0xff]
    %v2086 = vld [vmem:[%s9 + $0x20] sm:$0xff]
    %v2087 = vld [vmem:[%s9 + $0x28] sm:$0xff]
    %v2088 = vld [vmem:[%s9 + $0x30] sm:$0xff]
    %v2089 = vld [vmem:[%s9 + $0x38] sm:$0xff]
    %v2090 = vld [vmem:[%s9 + $0x40] sm:$0xff]
    %v2091 = vld [vmem:[%s9 + $0x48] sm:$0xff]
    %v2092 = vld [vmem:[%s9 + $0x50] sm:$0xff]
    %v2093 = vld [vmem:[%s9 + $0x58] sm:$0xff]
    %v2094 = vld [vmem:[%s9 + $0x60] sm:$0xff]
    %v2095 = vld [vmem:[%s9 + $0x68] sm:$0xff]
    %v2096 = vld [vmem:[%s9 + $0x70] sm:$0xff]
    %v2097 = vld [vmem:[%s9 + $0x78] sm:$0xff]
    %2098 = vmatpush.msra.mxu0 %v2097
    %2099 = vmatpush.msra.mxu0 %v2096
    %2100 = vmatpush.msra.mxu0 %v2095
    %2101 = vmatpush.msra.mxu0 %v2094
    %2102 = vmatpush.msra.mxu0 %v2093
    %2103 = vmatpush.msra.mxu0 %v2092
    %2104 = vmatpush.msra.mxu0 %v2091
    %2105 = vmatpush.msra.mxu0 %v2090
    %2106 = vmatpush.msra.mxu0 %v2089
    %2107 = vmatpush.msra.mxu0 %v2088
    %2108 = vmatpush.msra.mxu0 %v2087
    %2109 = vmatpush.msra.mxu0 %v2086
    %2110 = vmatpush.msra.mxu0 %v2085
    %2111 = vmatpush.msra.mxu0 %v2084
    %2112 = vmatpush.msra.mxu0 %v2083
    %2113 = vmatpush.msra.mxu0 %v2082
    %2114 = vmatmul.f32.gmra.mxu0 %v2080
    %v2115 = vpop.f32.mrf.mxu0
    %v2116 = vadd.f32 0.0, %v2115
    %2117 = vmatmul.f32.gmra.mxu0 %v2081
    %v2118 = vpop.f32.mrf.mxu0
    %v2119 = vadd.f32 0.0, %v2118
    %2120 = vdwg.mxu0
    %v2121 = vld [vmem:[%s10] sm:$0xf]
    %vm2122 = vcmask 31744
    %v2124 = vsel %vm2122, %v2116, 0
    %v2127 = vsel %vm2122, %v2119, 0
    %vm2129 = vcmask 1043456
    %v2131 = vsel %vm2129, %v2121, 0
    %2133 = vmatpush.msra.mxu0 0.0
    %2134 = vmatpush.msra.mxu0 0.0
    %2135 = vmatpush.msra.mxu0 0.0
    %2136 = vmatpush.msra.mxu0 0.0
    %2137 = vmatpush.msra.mxu0 0.0
    %2138 = vmatpush.msra.mxu0 0.0
    %2139 = vmatpush.msra.mxu0 0.0
    %2140 = vmatpush.msra.mxu0 0.0
    %2141 = vmatpush.msra.mxu0 0.0
    %2142 = vmatpush.msra.mxu0 0.0
    %2143 = vmatpush.msra.mxu0 0.0
    %2144 = vmatpush.msra.mxu0 0.0
    %2145 = vmatpush.msra.mxu0 0.0
    %2146 = vmatpush.msra.mxu0 0.0
    %2147 = vmatpush.msra.mxu0 0.0
    %2148 = vmatpush.msra.mxu0 %v2131
    %2149 = vmatmul.f32.gmra.mxu0 %v2124
    %v2150 = vpop.f32.mrf.mxu0
    %v2151 = vadd.f32 0.0, %v2150
    %2152 = vmatmul.f32.gmra.mxu0 %v2127
    %v2153 = vpop.f32.mrf.mxu0
    %v2154 = vadd.f32 0.0, %v2153
    %2155 = vdwg.mxu0
    %2156 = vxpose.xlu0.b32.start [1/16] %v2151, 128
    %2157 = vxpose.xlu0.b32.cont [2/16] %v2154, 128
    %2158 = vxpose.xlu0.b32.cont [3/16] 0.0, 128
    %2159 = vxpose.xlu0.b32.cont [4/16] 0.0, 128
    %2160 = vxpose.xlu0.b32.cont [5/16] 0.0, 128
    %2161 = vxpose.xlu0.b32.cont [6/16] 0.0, 128
    %2162 = vxpose.xlu0.b32.cont [7/16] 0.0, 128
    %2163 = vxpose.xlu0.b32.cont [8/16] 0.0, 128
    %2164 = vxpose.xlu0.b32.cont [9/16] 0.0, 128
    %2165 = vxpose.xlu0.b32.cont [10/16] 0.0, 128
    %2166 = vxpose.xlu0.b32.cont [11/16] 0.0, 128
    %2167 = vxpose.xlu0.b32.cont [12/16] 0.0, 128
    %2168 = vxpose.xlu0.b32.cont [13/16] 0.0, 128
    %2169 = vxpose.xlu0.b32.cont [14/16] 0.0, 128
    %2170 = vxpose.xlu0.b32.cont [15/16] 0.0, 128
    %2171 = vxpose.xlu0.b32.end [16/16] 0.0, 128
    %v2172 = vpop.trf.xlu0
    %v2173 = vpop.trf.xlu0
    %v2174 = vpop.trf.xlu0
    %v2175 = vpop.trf.xlu0
    %v2176 = vpop.trf.xlu0
    %v2177 = vpop.trf.xlu0
    %v2178 = vpop.trf.xlu0
    %v2179 = vpop.trf.xlu0
    %v2180 = vpop.trf.xlu0
    %v2181 = vpop.trf.xlu0
    %v2182 = vpop.trf.xlu0
    %v2183 = vpop.trf.xlu0
    %v2184 = vpop.trf.xlu0
    %v2185 = vpop.trf.xlu0
    %v2186 = vpop.trf.xlu0
    %v2187 = vpop.trf.xlu0
    %v2188 = vperm.slane %v2172, 1
    %v2189 = vlaneseq
    %v2190 = vshrl.u32 %v2189, 7
    %2192 = vset.pattern.permute.xlu0 %v2190
    %2193 = vperm.xlu0 %2192, %v2188
    %v2194 = vpop.permute.xlu0 %2193
    %v2195 = vlaneseq
    %v2196 = vshrl.u32 %v2195, 7
    %v2197 = vadd.s32 %v2196, 8
    %2198 = vset.pattern.permute.xlu0 %v2197
    %2199 = vperm.xlu0 %2198, %v2188
    %v2200 = vpop.permute.xlu0 %2199
    %v2201 = vperm.slane %v2172, 0
    %v2202 = vadd.f32 %v2194, %v2201
    %v2203 = vadd.f32 %v2200, %v2201
    %vm2204 = vcmp.gt.f32.partialorder %v2202, 0.0
    %vm2205 = vcmp.gt.f32.partialorder %v2203, 0.0
    %v2206 = vmul.f32 %v2202, 0.2
    %v2207 = vmul.f32 %v2203, 0.2
    %v2208 = vsel %vm2204, %v2202, %v2206
    %v2209 = vsel %vm2205, %v2203, %v2207
    %v2210 = vadd.f32 %v2208, %v46
    %v2211 = vadd.f32 %v2209, %v47
    %v2212 = vsel %vm255, %v2210, -inf
    %2213 = vmax.xlane.f32.xlu0 %v2212
    %v2214 = vpop.xlane.xlu0 %2213
    %v2215 = vsel %vm255, %v2211, -inf
    %2216 = vmax.xlane.f32.xlu0 %v2215
    %v2217 = vpop.xlane.xlu0 %2216
    %v2218 = vsub.f32 %v2210, %v2214
    %v2219 = vsub.f32 %v2211, %v2217
    %v2220 = vmul.f32 %v2218, 1.442695
    %v2221 = vpow.pop %v2220
    %v2222 = vmul.f32 %v2219, 1.442695
    %v2223 = vpow.pop %v2222
    %v2224 = vsel %vm255, %v2221, 0.0
    %2225 = vadd.xlane.f32.xlu0 %v2224
    %v2226 = vpop.xlane.xlu0 %2225
    %v2227 = vsel %vm255, %v2223, 0.0
    %2228 = vadd.xlane.f32.xlu0 %v2227
    %v2229 = vpop.xlane.xlu0 %2228
    %v2230 = vrcp.pop %v2226
    %v2231 = vmul.f32 %v2226, %v2230
    %v2232 = vsub.f32 1.0, %v2231
    %v2233 = vmul.f32 %v2230, %v2232
    %v2234 = vadd.f32 %v2230, %v2233
    %vm2235 = vweird.f32 %v2226
    %vm2236 = vweird.f32 %v2230
    %vm2237 = vmor %vm2235, %vm2236
    %v2238 = vsel %vm2237, %v2230, %v2234
    %v2239 = vand.u32 2147483647, %v2226
    %vm2240 = vcmp.eq.f32.partialorder %v2239, 8.507059e+37
    %v2241 = vand.u32 %v2226, 2147483648
    %v2242 = vor.u32 1.1754944e-38, %v2241
    %v2243 = vsel %vm2240, %v2242, %v2238
    %v2244 = vmul.f32 %v2221, %v2243
    %v2245 = vrcp.pop %v2229
    %v2246 = vmul.f32 %v2229, %v2245
    %v2247 = vsub.f32 1.0, %v2246
    %v2248 = vmul.f32 %v2245, %v2247
    %v2249 = vadd.f32 %v2245, %v2248
    %vm2250 = vweird.f32 %v2229
    %vm2251 = vweird.f32 %v2245
    %vm2252 = vmor %vm2250, %vm2251
    %v2253 = vsel %vm2252, %v2245, %v2249
    %v2254 = vand.u32 2147483647, %v2229
    %vm2255 = vcmp.eq.f32.partialorder %v2254, 8.507059e+37
    %v2256 = vand.u32 %v2229, 2147483648
    %v2257 = vor.u32 1.1754944e-38, %v2256
    %v2258 = vsel %vm2255, %v2257, %v2253
    %v2259 = vmul.f32 %v2223, %v2258
    %v2260 = vrot.slane %v2116, 1
    %v2261 = vrot.slane %v2116, 2
    %v2262 = vrot.slane %v2116, 3
    %v2263 = vrot.slane %v2116, 4
    %v2264 = vrot.slane %v2116, 5
    %v2265 = vrot.slane %v2116, 6
    %v2266 = vrot.slane %v2116, 7
    %v2267 = vrot.slane %v2119, 1
    %v2268 = vrot.slane %v2119, 2
    %v2269 = vrot.slane %v2119, 3
    %v2270 = vrot.slane %v2119, 4
    %v2271 = vrot.slane %v2119, 5
    %v2272 = vrot.slane %v2119, 6
    %v2273 = vrot.slane %v2119, 7
    %v2274 = vld [vmem:[%s11] sm:$0x1]
    %v2276 = vperm.slane %v2274, 0
    %2278 = vst [vmem:[#allocation1] ss:$9 sm:$0xff] %v2116
    %s2279 = scalar_lea.vmem [#allocation1], 1
    %2280 = vst [vmem:[%s2279] ss:$9 sm:$0xff] %v2260
    %s2281 = scalar_lea.vmem [#allocation1], 2
    %2282 = vst [vmem:[%s2281] ss:$9 sm:$0xff] %v2261
    %s2283 = scalar_lea.vmem [#allocation1], 3
    %2284 = vst [vmem:[%s2283] ss:$9 sm:$0xff] %v2262
    %s2285 = scalar_lea.vmem [#allocation1], 4
    %2286 = vst [vmem:[%s2285] ss:$9 sm:$0xff] %v2263
    %s2287 = scalar_lea.vmem [#allocation1], 5
    %2288 = vst [vmem:[%s2287] ss:$9 sm:$0xff] %v2264
    %s2289 = scalar_lea.vmem [#allocation1], 6
    %2290 = vst [vmem:[%s2289] ss:$9 sm:$0xff] %v2265
    %s2291 = scalar_lea.vmem [#allocation1], 7
    %2292 = vst [vmem:[%s2291] ss:$9 sm:$0xff] %v2266
    %v2293 = vld [vmem:[#allocation1] sm:$0xff]
    %2294 = vst [vmem:[#allocation1] ss:$9 sm:$0xff] %v2119
    %2295 = vst [vmem:[%s2279] ss:$9 sm:$0xff] %v2267
    %2296 = vst [vmem:[%s2281] ss:$9 sm:$0xff] %v2268
    %2297 = vst [vmem:[%s2283] ss:$9 sm:$0xff] %v2269
    %2298 = vst [vmem:[%s2285] ss:$9 sm:$0xff] %v2270
    %2299 = vst [vmem:[%s2287] ss:$9 sm:$0xff] %v2271
    %2300 = vst [vmem:[%s2289] ss:$9 sm:$0xff] %v2272
    %2301 = vst [vmem:[%s2291] ss:$9 sm:$0xff] %v2273
    %v2302 = vld [vmem:[#allocation1] sm:$0xff]
    %v2306 = vsel %vm255, %v2244, 0
    %v2309 = vsel %vm255, %v2259, 0
    %2311 = vmatpush.msra.mxu0 0.0
    %2312 = vmatpush.msra.mxu0 0.0
    %2313 = vmatpush.msra.mxu0 0.0
    %2314 = vmatpush.msra.mxu0 0.0
    %2315 = vmatpush.msra.mxu0 0.0
    %2316 = vmatpush.msra.mxu0 0.0
    %2317 = vmatpush.msra.mxu0 0.0
    %2318 = vmatpush.msra.mxu0 0.0
    %2319 = vmatpush.msra.mxu0 0.0
    %2320 = vmatpush.msra.mxu0 0.0
    %2321 = vmatpush.msra.mxu0 0.0
    %2322 = vmatpush.msra.mxu0 0.0
    %2323 = vmatpush.msra.mxu0 0.0
    %2324 = vmatpush.msra.mxu0 0.0
    %2325 = vmatpush.msra.mxu0 %v2302
    %2326 = vmatpush.msra.mxu0 %v2293
    %2327 = vmatmul.f32.gmra.mxu0 %v2306
    %v2328 = vpop.f32.mrf.mxu0
    %v2329 = vadd.f32 %v2276, %v2328
    %2330 = vmatmul.f32.gmra.mxu0 %v2309
    %v2331 = vpop.f32.mrf.mxu0
    %v2332 = vadd.f32 %v2276, %v2331
    %2333 = vdwg.mxu0
    %v2334 = vld [vmem:[%s2] sm:$0x3]
    %v2336 = vsel %vm255, %v2334, 0
    %2338 = vmatpush.msra.mxu0 0.0
    %2339 = vmatpush.msra.mxu0 0.0
    %2340 = vmatpush.msra.mxu0 0.0
    %2341 = vmatpush.msra.mxu0 0.0
    %2342 = vmatpush.msra.mxu0 0.0
    %2343 = vmatpush.msra.mxu0 0.0
    %2344 = vmatpush.msra.mxu0 0.0
    %2345 = vmatpush.msra.mxu0 0.0
    %2346 = vmatpush.msra.mxu0 0.0
    %2347 = vmatpush.msra.mxu0 0.0
    %2348 = vmatpush.msra.mxu0 0.0
    %2349 = vmatpush.msra.mxu0 0.0
    %2350 = vmatpush.msra.mxu0 0.0
    %2351 = vmatpush.msra.mxu0 0.0
    %2352 = vmatpush.msra.mxu0 %v2332
    %2353 = vmatpush.msra.mxu0 %v2329
    %2354 = vmatmul.f32.gmra.mxu0 %v2336
    %v2355 = vpop.f32.mrf.mxu0
    %v2356 = vadd.f32 0.0, %v2355
    %2357 = vdwg.mxu0
    %v2358 = vsub.f32 0.0, %v2356
    %v2359 = vmul.f32 %v2358, 1.442695
    %v2360 = vpow.pop %v2359
    %v2361 = vadd.f32 %v2360, 1.0
    %v2362 = vrcp.pop %v2361
    %vm2363 = vcmask 25600
    %2364 = vst.msk [vmem:[#allocation2] sm:$0x3] %vm2363, %v2362
    // Predicated region
    $region50: #{gatnet_forward.1} parent=1 // pred_check
      _
    $region51: #{gatnet_forward.1} parent=1 // pred_check_branch
      %2366 = sbr.rel (0) target = $region53
    $region52: #{gatnet_forward.1} parent=1 // pred_region
      %2368 = vsyncadd [#allocation3], 0
      %s2370 = sshll.u32 [#allocation2], 4
      %s2371 = int_to_ptr.vmem [resolvable:$true] %s2370
      %s2372 = sshll.u32 %s12, 4
      %s2373 = int_to_ptr.hbm [resolvable:$true] %s2372
      %2375 = dma.vmem_to_hbm [thread:$0]  %s2371, 32, %s2373, [#allocation3]
    $region53: #{gatnet_forward.1} parent=1 // pred_fallthru
      _
    // Predicated region
    $region54: #{gatnet_forward.1} parent=1 // pred_check
      _
    $region55: #{gatnet_forward.1} parent=1 // pred_check_branch
      %2377 = sbr.rel (0) target = $region57
    $region56: #{gatnet_forward.1} parent=1 // pred_region
      %2379 = dma.done [#allocation3], 32
    $region57: #{gatnet_forward.1} parent=1 // pred_fallthru
      _
    %2380 = vsyncpa [#allocation3], 1

</llo_original>
